<compile_context>
chip_gen: v5e
topology: v5e:2x2
jax: 0.10.0
libtpu: 0.0.40
codegen_flags: <defaults>
</compile_context>

<pallas_src>
import functools

import jax
import jax.numpy as jnp
from jax.experimental import pallas as pl
from jax.experimental.pallas import tpu as pltpu


def _round_up(x, m):
    return (x + m - 1) // m * m


def _cdiv(a, b):
    return -(-a // b)


@functools.lru_cache(maxsize=1)
def _vmem_limit_bytes():
    # 64 MiB on v5e/v6e (128 MiB physical), 32 MiB on v7x (64 MiB physical).
    try:
        cap = pltpu.get_tpu_info().vmem_capacity_bytes
        return min(cap // 2, 64 * 1024 * 1024)
    except Exception:
        return 32 * 1024 * 1024  # conservative, safe on every generation


def _pick_cout_tiles(cout):
    """Pad Cout to a lane-dense multiple of 128 and pick the N tile size."""
    cout_pad = _round_up(cout, 128)
    if cout_pad <= 512:
        return cout_pad, cout_pad
    if cout_pad % 512 == 0:
        return cout_pad, 512
    if cout_pad % 256 == 0:
        return cout_pad, 256
    return cout_pad, 128


# ---------------------------------------------------------------------------
# Path 1: fused im2col conv (stride == 1).
# ---------------------------------------------------------------------------
def _fused_conv_kernel(x_ref, w_ref, b_ref, o_ref, *, ksize, dil, wp):
    # x_ref: (1, Lpad, Cin)  whole padded image, flattened over (H, W);
    #        resident in VMEM across the (cout-tile, row-tile) grid axes.
    # w_ref: (K, K, Cin, tn) conv weights for this Cout tile.
    # b_ref: (1, tn)  f32 bias for this Cout tile.
    # o_ref: (1, tq, tn) "wide" output rows (q = ho * Wp + w), lane-dense.
    tq = o_ref.shape[1]
    tn = o_ref.shape[2]
    q0 = pl.program_id(2) * tq
    # Bias-initialised f32 accumulator (no finalize add, no extra VMEM scratch).
    acc = jnp.broadcast_to(b_ref[...], (tq, tn))
    # Static K*K unroll: every tap is a dynamic VMEM slice + one MXU dot.
    for kh in range(ksize):
        for kw in range(ksize):
            a = x_ref[0, pl.ds(q0 + (kh * wp + kw) * dil, tq), :]
            acc = acc + jnp.dot(a, w_ref[kh, kw],
                                preferred_element_type=jnp.float32)
    o_ref[0, :, :] = acc.astype(o_ref.dtype)


def _conv_fused(x_nhwc, w_hwio, bias_row, K, dil, out_dtype, vmem_limit):
    """stride-1 conv; x_nhwc already spatially padded and cast. Returns NHWC."""
    N, Hp, Wp, Cin = x_nhwc.shape
    Hout = Hp - dil * (K - 1)
    Wout = Wp - dil * (K - 1)
    Cout = w_hwio.shape[-1]

    cout_pad, tn = _pick_cout_tiles(Cout)
    if cout_pad != Cout:
        w_hwio = jnp.pad(w_hwio, ((0, 0), (0, 0), (0, 0), (0, cout_pad - Cout)))
        bias_row = jnp.pad(bias_row, ((0, 0), (0, cout_pad - Cout)))
    nj = cout_pad // tn

    # "Wide" output: Wp columns per output row; junk right-edge columns and
    # padded Cout columns are sliced off (fused into the final transpose).
    Q = Hout * Wp
    tq = min(512, (Q // 8) * 8) if Q >= 8 else Q
    nq = _cdiv(Q, tq)
    if N * nq * nj < 2 and Q >= 16:  # keep both v7x TensorCores busy
        tq = _round_up(_cdiv(Q, 2), 8)
        nq = _cdiv(Q, tq)

    # Flatten (H, W) -> one axis; pad so every (kh, kw)-shifted tile read stays
    # in bounds (the partial last row-tile's extra output rows are masked).
    x_flat = x_nhwc.reshape(N, Hp * Wp, Cin)
    need = nq * tq + (K - 1) * dil * (Wp + 1)
    extra = max(0, need - Hp * Wp)
    if extra:
        x_flat = jnp.pad(x_flat, ((0, 0), (0, extra), (0, 0)))
    Lpad = Hp * Wp + extra

    kernel = functools.partial(_fused_conv_kernel, ksize=K, dil=dil, wp=Wp)
    out_wide = pl.pallas_call(
        kernel,
        out_shape=jax.ShapeDtypeStruct((N, Q, cout_pad), out_dtype),
        grid_spec=pltpu.PrefetchScalarGridSpec(
            num_scalar_prefetch=0,
            # Grid (n, j, i): image resident across (j, i); weights/bias
            # resident across i.
            grid=(N, nj, nq),
            in_specs=[
                pl.BlockSpec((1, Lpad, Cin), lambda n, j, i: (n, 0, 0)),
                pl.BlockSpec((K, K, Cin, tn), lambda n, j, i: (0, 0, 0, j)),
                pl.BlockSpec((1, tn), lambda n, j, i: (0, j)),
            ],
            out_specs=pl.BlockSpec((1, tq, tn), lambda n, j, i: (n, i, j)),
        ),
        compiler_params=pltpu.CompilerParams(
            dimension_semantics=("parallel", "parallel", "parallel"),
            vmem_limit_bytes=vmem_limit,
        ),
    )(x_flat, w_hwio, bias_row)

    # (N, Hout*Wp, cout_pad) -> (N, Hout, Wout, Cout); slices fuse with the
    # caller's NCHW transpose.
    return out_wide.reshape(N, Hout, Wp, cout_pad)[:, :, :Wout, :Cout]


# ---------------------------------------------------------------------------
# Path 2: im2col GEMM fallback (stride > 1 or image too large for VMEM).
# ---------------------------------------------------------------------------
def _conv_gemm_kernel(a_ref, w_ref, b_ref, o_ref, acc_ref):
    # a_ref: (TM, TK) im2col patch tile; w_ref: (TK, TN) weights;
    # b_ref: (1, TN) f32 bias; o_ref: (TM, TN); acc_ref: (TM, TN) f32 scratch
    # persisting across the k (contraction) grid axis.
    @pl.when(pl.program_id(2) == 0)
    def _init():
        acc_ref[...] = jnp.broadcast_to(b_ref[...], acc_ref.shape)

    acc_ref[...] += jnp.dot(a_ref[...], w_ref[...],
                            preferred_element_type=jnp.float32)

    @pl.when(pl.program_id(2) == pl.num_programs(2) - 1)
    def _finalize():
        o_ref[...] = acc_ref[...].astype(o_ref.dtype)


def _conv_gemm(patches, w_mat, bias_row, out_dtype, vmem_limit):
    """patches (M, CKK) @ w_mat (CKK, Cout) + bias -> (M, Cout)."""
    M, CKK = patches.shape
    Cout = w_mat.shape[1]
    isz = jnp.dtype(patches.dtype).itemsize
    osz = jnp.dtype(out_dtype).itemsize

    cout_pad, tn = _pick_cout_tiles(Cout)

    # Contraction axis: one full block when small, otherwise streamed tiles.
    if CKK <= 2048:
        tk, ckk_pad = CKK, CKK
    else:
        tk = 1024 if isz <= 2 else 512
        ckk_pad = _round_up(CKK, tk)

    # M tile: largest that fits the VMEM budget (double-buffered in/out + acc).
    budget = int(0.7 * vmem_limit)
    tm = 1024
    while tm > 128:
        est = 2 * tm * tk * isz + 2 * tk * tn * isz + 2 * tm * tn * osz + tm * tn * 4
        if est <= budget:
            break
        tm //= 2
    tm = min(tm, _round_up(M, 8))
    nj = cout_pad // tn
    if _cdiv(M, tm) * nj < 2 and M >= 16:  # >= 2 blocks on the parallel axes (v7x)
        tm = _round_up(_cdiv(M, 2), 8)

    if cout_pad != Cout:
        w_mat = jnp.pad(w_mat, ((0, 0), (0, cout_pad - Cout)))
        bias_row = jnp.pad(bias_row, ((0, 0), (0, cout_pad - Cout)))
    if ckk_pad != CKK:  # zero padding along the contraction dim is a no-op
        patches = jnp.pad(patches, ((0, 0), (0, ckk_pad - CKK)))
        w_mat = jnp.pad(w_mat, ((0, ckk_pad - CKK), (0, 0)))

    grid = (_cdiv(M, tm), cout_pad // tn, ckk_pad // tk)

    # Partial last M block: OOB patch rows feed garbage into acc rows whose
    # output rows are masked on writeback (never read elsewhere).
    out = pl.pallas_call(
        _conv_gemm_kernel,
        out_shape=jax.ShapeDtypeStruct((M, cout_pad), out_dtype),
        grid_spec=pltpu.PrefetchScalarGridSpec(
            num_scalar_prefetch=0,
            grid=grid,
            in_specs=[
                pl.BlockSpec((tm, tk), lambda i, j, k: (i, k)),
                pl.BlockSpec((tk, tn), lambda i, j, k: (k, j)),
                pl.BlockSpec((1, tn), lambda i, j, k: (0, j)),
            ],
            out_specs=pl.BlockSpec((tm, tn), lambda i, j, k: (i, j)),
            scratch_shapes=[pltpu.VMEM((tm, tn), jnp.float32)],
        ),
        compiler_params=pltpu.CompilerParams(
            dimension_semantics=("parallel", "parallel", "arbitrary"),
            vmem_limit_bytes=vmem_limit,
        ),
    )(patches, w_mat, bias_row)
    return out[:, :Cout]


def _im2col_nhwc(x_pad, K, stride, dilation):
    """x_pad (N, Hp, Wp, C) -> (N*Hout*Wout, K*K*C); col order (kh*K+kw)*C + c."""
    N, H, W, C = x_pad.shape
    Hout = (H - dilation * (K - 1) - 1) // stride + 1
    Wout = (W - dilation * (K - 1) - 1) // stride + 1
    slices = []
    for kh in range(K):
        for kw in range(K):
            h0, w0 = kh * dilation, kw * dilation
            sl = x_pad[
                :,
                h0 : h0 + stride * (Hout - 1) + 1 : stride,
                w0 : w0 + stride * (Wout - 1) + 1 : stride,
                :,
            ]
            slices.append(sl)
    cols = jnp.concatenate(slices, axis=-1)
    return cols.reshape(N * Hout * Wout, K * K * C), Hout, Wout


# ---------------------------------------------------------------------------
# Forward wrapper (weights are traced args -> no stale baked-in constants).
# ---------------------------------------------------------------------------
@functools.partial(
    jax.jit,
    static_argnames=("kernel_size", "stride", "padding", "dilation", "groups",
                     "compute_dtype"),
)
def normal_conv2d_forward(x, weight, bias, *, kernel_size, stride=1, padding=0,
                          dilation=1, groups=1, compute_dtype=jnp.bfloat16):
    """Same math as F.conv2d(x, weight, bias, stride, padding, dilation, 1)."""
    if groups != 1:
        raise NotImplementedError("groups != 1 is not supported")
    N, Cin, _, _ = x.shape
    Cout = weight.shape[0]
    K = kernel_size
    out_dtype = x.dtype
    cdt = jnp.dtype(compute_dtype) if compute_dtype is not None else x.dtype
    isz = jnp.dtype(cdt).itemsize

    # Cast at input size, BEFORE any im2col / layout blow-up.
    x_nhwc = jnp.transpose(x, (0, 2, 3, 1)).astype(cdt)
    if padding:
        x_nhwc = jnp.pad(
            x_nhwc, ((0, 0), (padding, padding), (padding, padding), (0, 0)))
    w_hwio = jnp.transpose(weight, (2, 3, 1, 0)).astype(cdt)  # (K, K, Cin, Cout)
    bias_row = bias.reshape(1, Cout).astype(jnp.float32)

    Hp, Wp = x_nhwc.shape[1], x_nhwc.shape[2]
    Hout = (Hp - dilation * (K - 1) - 1) // stride + 1
    Wout = (Wp - dilation * (K - 1) - 1) // stride + 1

    vmem_limit = _vmem_limit_bytes()
    est_fused = (2 * Hp * Wp * Cin * isz
                 + 2 * K * K * Cin * min(_round_up(Cout, 128), 512) * isz
                 + 3 * 512 * 512 * 4)
    use_fused = (stride == 1) and (est_fused <= int(0.75 * vmem_limit))

    if use_fused:
        out_nhwc = _conv_fused(x_nhwc, w_hwio, bias_row, K, dilation,
                               out_dtype, vmem_limit)
    else:
        patches, Hout, Wout = _im2col_nhwc(x_nhwc, K, stride, dilation)
        w_mat = w_hwio.reshape(K * K * Cin, Cout)
        out_mat = _conv_gemm(patches, w_mat, bias_row, out_dtype, vmem_limit)
        out_nhwc = out_mat.reshape(N, Hout, Wout, Cout)

    # PyTorch conv2d returns NCHW; this single output-sized transpose also
    # absorbs the wide-column / padded-Cout slices.
    return jnp.transpose(out_nhwc, (0, 3, 1, 2))


class NormalConv2d:
    """JAX/Pallas port of the PyTorch NormalConv2d module (forward only)."""

    def __init__(self, in_channels, out_channels, kernel_size, stride=1,
                 padding=0, dilation=1, groups=1, bias=True,
                 padding_mode="zeros", device=None, dtype=jnp.float32,
                 key=None, compute_dtype=jnp.bfloat16):
        assert padding_mode == "zeros"
        self.in_channels = in_channels
        self.out_channels = out_channels
        self.kernel_size = kernel_size
        self.stride = stride
        self.padding = padding
        self.dilation = dilation
        self.groups = groups
        self.compute_dtype = compute_dtype
        key = key if key is not None else jax.random.PRNGKey(0)
        kw_key, kb_key = jax.random.split(key)
        # torch.randn init: weight (Cout, Cin, K, K); bias (Cout,) is always
        # created by the reference module (its `bias` flag gets overwritten).
        self.weight = jax.random.normal(
            kw_key, (out_channels, in_channels, kernel_size, kernel_size),
            dtype=dtype)
        self.bias = jax.random.normal(kb_key, (out_channels,), dtype=dtype)

    def __call__(self, x):
        return normal_conv2d_forward(
            x, self.weight, self.bias,
            kernel_size=self.kernel_size, stride=self.stride,
            padding=self.padding, dilation=self.dilation, groups=self.groups,
            compute_dtype=self.compute_dtype)


# --------------------------------- main --------------------------------------
if __name__ == "__main__":
    key = jax.random.PRNGKey(0)
    k_x, k_p = jax.random.split(key)

    N, Cin, H, W = 2, 4, 16, 16
    Cout, K = 8, 3
    x = jax.random.normal(k_x, (N, Cin, H, W), dtype=jnp.float32)

    def _ref(conv, strides, pads):
        return jax.lax.conv_general_dilated(
            x, conv.weight, window_strides=strides, padding=pads,
            dimension_numbers=("NCHW", "OIHW", "NCHW"),
        ) + conv.bias.reshape(1, Cout, 1, 1)

    # 1) Fused-im2col path, f32 compute (tight check).
    conv_f32 = NormalConv2d(Cin, Cout, K, key=k_p, compute_dtype=jnp.float32)
    out1 = jax.block_until_ready(conv_f32(x))
    ref1 = _ref(conv_f32, (1, 1), "VALID")
    assert out1.shape == (N, Cout, H - K + 1, W - K + 1), out1.shape
    assert jnp.allclose(out1, ref1, atol=1e-4, rtol=1e-4), float(
        jnp.max(jnp.abs(out1 - ref1)))

    # 2) Fused-im2col path, default bf16 MXU operands + padding (loose check).
    conv_bf16 = NormalConv2d(Cin, Cout, K, padding=1, key=k_p)
    out2 = jax.block_until_ready(conv_bf16(x))
    ref2 = _ref(conv_bf16, (1, 1), [(1, 1), (1, 1)])
    assert out2.shape == (N, Cout, H, W), out2.shape
    assert jnp.allclose(out2, ref2, atol=0.5, rtol=0.05), float(
        jnp.max(jnp.abs(out2 - ref2)))

    # 3) im2col-GEMM fallback path (stride=2), f32 compute (tight check).
    conv_s2 = NormalConv2d(Cin, Cout, K, stride=2, padding=1, key=k_p,
                           compute_dtype=jnp.float32)
    out3 = jax.block_until_ready(conv_s2(x))
    ref3 = _ref(conv_s2, (2, 2), [(1, 1), (1, 1)])
    assert out3.shape == (N, Cout, 8, 8), out3.shape
    assert jnp.allclose(out3, ref3, atol=1e-4, rtol=1e-4), float(
        jnp.max(jnp.abs(out3 - ref3)))

    print("KERNEL_OK")
</pallas_src>

<mosaic_0001>
module attributes {stable_mosaic.version = 11 : i64} {
  func.func @_fused_conv_kernel(%arg0: i32, %arg1: i32, %arg2: i32, %arg3: memref<1x258x4xf32, #tpu.memory_space<vmem>>, %arg4: memref<3x3x4x128xf32, #tpu.memory_space<vmem>>, %arg5: memref<1x128xf32, #tpu.memory_space<vmem>>, %arg6: memref<1x224x128xf32, #tpu.memory_space<vmem>>) attributes {dimension_semantics = [#tpu.dimension_semantics<parallel>, #tpu.dimension_semantics<parallel>, #tpu.dimension_semantics<parallel>], iteration_bounds = array<i64: 2, 1, 1>, scalar_prefetch = 0 : i64, scratch_operands = 0 : i64, tpu.core_type = #tpu.core_type<tc>, window_params = [{transform_indices = @transform_0, window_bounds = array<i64: 1, 258, 4>}, {transform_indices = @transform_1, window_bounds = array<i64: 3, 3, 4, 128>}, {transform_indices = @transform_2, window_bounds = array<i64: 1, 128>}, {transform_indices = @transform_3, window_bounds = array<i64: 1, 224, 128>}]} {
    %c224_i32 = arith.constant 224 : i32
    %0 = arith.muli %arg2, %c224_i32 : i32
    %c0 = arith.constant 0 : index
    %c0_0 = arith.constant 0 : index
    %1 = vector.load %arg5[%c0, %c0_0] : memref<1x128xf32, #tpu.memory_space<vmem>>, vector<1x128xf32>
    %2 = vector.shape_cast %1 : vector<1x128xf32> to vector<1x128xf32>
    %3 = vector.broadcast %2 : vector<1x128xf32> to vector<224x128xf32>
    %c0_i32 = arith.constant 0 : i32
    %4 = arith.addi %0, %c0_i32 : i32
    %c0_1 = arith.constant 0 : index
    %5 = arith.index_cast %4 : i32 to index
    %c0_2 = arith.constant 0 : index
    %6 = vector.load %arg3[%c0_1, %5, %c0_2] : memref<1x258x4xf32, #tpu.memory_space<vmem>>, vector<1x224x4xf32>
    %7 = vector.shape_cast %6 : vector<1x224x4xf32> to vector<224x4xf32>
    %c0_3 = arith.constant 0 : index
    %c0_4 = arith.constant 0 : index
    %c0_5 = arith.constant 0 : index
    %c0_6 = arith.constant 0 : index
    %8 = vector.load %arg4[%c0_3, %c0_4, %c0_5, %c0_6] : memref<3x3x4x128xf32, #tpu.memory_space<vmem>>, vector<1x1x4x128xf32>
    %9 = vector.shape_cast %8 : vector<1x1x4x128xf32> to vector<4x128xf32>
    %cst = arith.constant dense<0.000000e+00> : vector<224x128xf32>
    %10 = tpu.matmul %7, %9, %cst {dimension_numbers = #tpu.dot_dimension_numbers<[1], [0], [0], [1], [0, 0, 1, 1], [], []>} : vector<224x4xf32>, vector<4x128xf32>, vector<224x128xf32> -> vector<224x128xf32>
    %11 = arith.addf %3, %10 : vector<224x128xf32>
    %c1_i32 = arith.constant 1 : i32
    %12 = arith.addi %0, %c1_i32 : i32
    %c0_7 = arith.constant 0 : index
    %13 = arith.index_cast %12 : i32 to index
    %c0_8 = arith.constant 0 : index
    %14 = vector.load %arg3[%c0_7, %13, %c0_8] : memref<1x258x4xf32, #tpu.memory_space<vmem>>, vector<1x224x4xf32>
    %15 = vector.shape_cast %14 : vector<1x224x4xf32> to vector<224x4xf32>
    %c0_9 = arith.constant 0 : index
    %c1 = arith.constant 1 : index
    %c0_10 = arith.constant 0 : index
    %c0_11 = arith.constant 0 : index
    %16 = vector.load %arg4[%c0_9, %c1, %c0_10, %c0_11] : memref<3x3x4x128xf32, #tpu.memory_space<vmem>>, vector<1x1x4x128xf32>
    %17 = vector.shape_cast %16 : vector<1x1x4x128xf32> to vector<4x128xf32>
    %cst_12 = arith.constant dense<0.000000e+00> : vector<224x128xf32>
    %18 = tpu.matmul %15, %17, %cst_12 {dimension_numbers = #tpu.dot_dimension_numbers<[1], [0], [0], [1], [0, 0, 1, 1], [], []>} : vector<224x4xf32>, vector<4x128xf32>, vector<224x128xf32> -> vector<224x128xf32>
    %19 = arith.addf %11, %18 : vector<224x128xf32>
    %c2_i32 = arith.constant 2 : i32
    %20 = arith.addi %0, %c2_i32 : i32
    %c0_13 = arith.constant 0 : index
    %21 = arith.index_cast %20 : i32 to index
    %c0_14 = arith.constant 0 : index
    %22 = vector.load %arg3[%c0_13, %21, %c0_14] : memref<1x258x4xf32, #tpu.memory_space<vmem>>, vector<1x224x4xf32>
    %23 = vector.shape_cast %22 : vector<1x224x4xf32> to vector<224x4xf32>
    %c0_15 = arith.constant 0 : index
    %c2 = arith.constant 2 : index
    %c0_16 = arith.constant 0 : index
    %c0_17 = arith.constant 0 : index
    %24 = vector.load %arg4[%c0_15, %c2, %c0_16, %c0_17] : memref<3x3x4x128xf32, #tpu.memory_space<vmem>>, vector<1x1x4x128xf32>
    %25 = vector.shape_cast %24 : vector<1x1x4x128xf32> to vector<4x128xf32>
    %cst_18 = arith.constant dense<0.000000e+00> : vector<224x128xf32>
    %26 = tpu.matmul %23, %25, %cst_18 {dimension_numbers = #tpu.dot_dimension_numbers<[1], [0], [0], [1], [0, 0, 1, 1], [], []>} : vector<224x4xf32>, vector<4x128xf32>, vector<224x128xf32> -> vector<224x128xf32>
    %27 = arith.addf %19, %26 : vector<224x128xf32>
    %c16_i32 = arith.constant 16 : i32
    %28 = arith.addi %0, %c16_i32 : i32
    %c0_19 = arith.constant 0 : index
    %29 = arith.index_cast %28 : i32 to index
    %c0_20 = arith.constant 0 : index
    %30 = vector.load %arg3[%c0_19, %29, %c0_20] : memref<1x258x4xf32, #tpu.memory_space<vmem>>, vector<1x224x4xf32>
    %31 = vector.shape_cast %30 : vector<1x224x4xf32> to vector<224x4xf32>
    %c1_21 = arith.constant 1 : index
    %c0_22 = arith.constant 0 : index
    %c0_23 = arith.constant 0 : index
    %c0_24 = arith.constant 0 : index
    %32 = vector.load %arg4[%c1_21, %c0_22, %c0_23, %c0_24] : memref<3x3x4x128xf32, #tpu.memory_space<vmem>>, vector<1x1x4x128xf32>
    %33 = vector.shape_cast %32 : vector<1x1x4x128xf32> to vector<4x128xf32>
    %cst_25 = arith.constant dense<0.000000e+00> : vector<224x128xf32>
    %34 = tpu.matmul %31, %33, %cst_25 {dimension_numbers = #tpu.dot_dimension_numbers<[1], [0], [0], [1], [0, 0, 1, 1], [], []>} : vector<224x4xf32>, vector<4x128xf32>, vector<224x128xf32> -> vector<224x128xf32>
    %35 = arith.addf %27, %34 : vector<224x128xf32>
    %c17_i32 = arith.constant 17 : i32
    %36 = arith.addi %0, %c17_i32 : i32
    %c0_26 = arith.constant 0 : index
    %37 = arith.index_cast %36 : i32 to index
    %c0_27 = arith.constant 0 : index
    %38 = vector.load %arg3[%c0_26, %37, %c0_27] : memref<1x258x4xf32, #tpu.memory_space<vmem>>, vector<1x224x4xf32>
    %39 = vector.shape_cast %38 : vector<1x224x4xf32> to vector<224x4xf32>
    %c1_28 = arith.constant 1 : index
    %c1_29 = arith.constant 1 : index
    %c0_30 = arith.constant 0 : index
    %c0_31 = arith.constant 0 : index
    %40 = vector.load %arg4[%c1_28, %c1_29, %c0_30, %c0_31] : memref<3x3x4x128xf32, #tpu.memory_space<vmem>>, vector<1x1x4x128xf32>
    %41 = vector.shape_cast %40 : vector<1x1x4x128xf32> to vector<4x128xf32>
    %cst_32 = arith.constant dense<0.000000e+00> : vector<224x128xf32>
    %42 = tpu.matmul %39, %41, %cst_32 {dimension_numbers = #tpu.dot_dimension_numbers<[1], [0], [0], [1], [0, 0, 1, 1], [], []>} : vector<224x4xf32>, vector<4x128xf32>, vector<224x128xf32> -> vector<224x128xf32>
    %43 = arith.addf %35, %42 : vector<224x128xf32>
    %c18_i32 = arith.constant 18 : i32
    %44 = arith.addi %0, %c18_i32 : i32
    %c0_33 = arith.constant 0 : index
    %45 = arith.index_cast %44 : i32 to index
    %c0_34 = arith.constant 0 : index
    %46 = vector.load %arg3[%c0_33, %45, %c0_34] : memref<1x258x4xf32, #tpu.memory_space<vmem>>, vector<1x224x4xf32>
    %47 = vector.shape_cast %46 : vector<1x224x4xf32> to vector<224x4xf32>
    %c1_35 = arith.constant 1 : index
    %c2_36 = arith.constant 2 : index
    %c0_37 = arith.constant 0 : index
    %c0_38 = arith.constant 0 : index
    %48 = vector.load %arg4[%c1_35, %c2_36, %c0_37, %c0_38] : memref<3x3x4x128xf32, #tpu.memory_space<vmem>>, vector<1x1x4x128xf32>
    %49 = vector.shape_cast %48 : vector<1x1x4x128xf32> to vector<4x128xf32>
    %cst_39 = arith.constant dense<0.000000e+00> : vector<224x128xf32>
    %50 = tpu.matmul %47, %49, %cst_39 {dimension_numbers = #tpu.dot_dimension_numbers<[1], [0], [0], [1], [0, 0, 1, 1], [], []>} : vector<224x4xf32>, vector<4x128xf32>, vector<224x128xf32> -> vector<224x128xf32>
    %51 = arith.addf %43, %50 : vector<224x128xf32>
    %c32_i32 = arith.constant 32 : i32
    %52 = arith.addi %0, %c32_i32 : i32
    %c0_40 = arith.constant 0 : index
    %53 = arith.index_cast %52 : i32 to index
    %c0_41 = arith.constant 0 : index
    %54 = vector.load %arg3[%c0_40, %53, %c0_41] : memref<1x258x4xf32, #tpu.memory_space<vmem>>, vector<1x224x4xf32>
    %55 = vector.shape_cast %54 : vector<1x224x4xf32> to vector<224x4xf32>
    %c2_42 = arith.constant 2 : index
    %c0_43 = arith.constant 0 : index
    %c0_44 = arith.constant 0 : index
    %c0_45 = arith.constant 0 : index
    %56 = vector.load %arg4[%c2_42, %c0_43, %c0_44, %c0_45] : memref<3x3x4x128xf32, #tpu.memory_space<vmem>>, vector<1x1x4x128xf32>
    %57 = vector.shape_cast %56 : vector<1x1x4x128xf32> to vector<4x128xf32>
    %cst_46 = arith.constant dense<0.000000e+00> : vector<224x128xf32>
    %58 = tpu.matmul %55, %57, %cst_46 {dimension_numbers = #tpu.dot_dimension_numbers<[1], [0], [0], [1], [0, 0, 1, 1], [], []>} : vector<224x4xf32>, vector<4x128xf32>, vector<224x128xf32> -> vector<224x128xf32>
    %59 = arith.addf %51, %58 : vector<224x128xf32>
    %c33_i32 = arith.constant 33 : i32
    %60 = arith.addi %0, %c33_i32 : i32
    %c0_47 = arith.constant 0 : index
    %61 = arith.index_cast %60 : i32 to index
    %c0_48 = arith.constant 0 : index
    %62 = vector.load %arg3[%c0_47, %61, %c0_48] : memref<1x258x4xf32, #tpu.memory_space<vmem>>, vector<1x224x4xf32>
    %63 = vector.shape_cast %62 : vector<1x224x4xf32> to vector<224x4xf32>
    %c2_49 = arith.constant 2 : index
    %c1_50 = arith.constant 1 : index
    %c0_51 = arith.constant 0 : index
    %c0_52 = arith.constant 0 : index
    %64 = vector.load %arg4[%c2_49, %c1_50, %c0_51, %c0_52] : memref<3x3x4x128xf32, #tpu.memory_space<vmem>>, vector<1x1x4x128xf32>
    %65 = vector.shape_cast %64 : vector<1x1x4x128xf32> to vector<4x128xf32>
    %cst_53 = arith.constant dense<0.000000e+00> : vector<224x128xf32>
    %66 = tpu.matmul %63, %65, %cst_53 {dimension_numbers = #tpu.dot_dimension_numbers<[1], [0], [0], [1], [0, 0, 1, 1], [], []>} : vector<224x4xf32>, vector<4x128xf32>, vector<224x128xf32> -> vector<224x128xf32>
    %67 = arith.addf %59, %66 : vector<224x128xf32>
    %c34_i32 = arith.constant 34 : i32
    %68 = arith.addi %0, %c34_i32 : i32
    %c0_54 = arith.constant 0 : index
    %69 = arith.index_cast %68 : i32 to index
    %c0_55 = arith.constant 0 : index
    %70 = vector.load %arg3[%c0_54, %69, %c0_55] : memref<1x258x4xf32, #tpu.memory_space<vmem>>, vector<1x224x4xf32>
    %71 = vector.shape_cast %70 : vector<1x224x4xf32> to vector<224x4xf32>
    %c2_56 = arith.constant 2 : index
    %c2_57 = arith.constant 2 : index
    %c0_58 = arith.constant 0 : index
    %c0_59 = arith.constant 0 : index
    %72 = vector.load %arg4[%c2_56, %c2_57, %c0_58, %c0_59] : memref<3x3x4x128xf32, #tpu.memory_space<vmem>>, vector<1x1x4x128xf32>
    %73 = vector.shape_cast %72 : vector<1x1x4x128xf32> to vector<4x128xf32>
    %cst_60 = arith.constant dense<0.000000e+00> : vector<224x128xf32>
    %74 = tpu.matmul %71, %73, %cst_60 {dimension_numbers = #tpu.dot_dimension_numbers<[1], [0], [0], [1], [0, 0, 1, 1], [], []>} : vector<224x4xf32>, vector<4x128xf32>, vector<224x128xf32> -> vector<224x128xf32>
    %75 = arith.addf %67, %74 : vector<224x128xf32>
    %c0_61 = arith.constant 0 : index
    %c0_62 = arith.constant 0 : index
    %c0_63 = arith.constant 0 : index
    %76 = vector.load %arg6[%c0_61, %c0_62, %c0_63] : memref<1x224x128xf32, #tpu.memory_space<vmem>>, vector<1x224x128xf32>
    %77 = vector.shape_cast %76 : vector<1x224x128xf32> to vector<224x128xf32>
    %78 = vector.shape_cast %75 : vector<224x128xf32> to vector<1x224x128xf32>
    tpu.vector_store %arg6[%c0_61, %c0_62, %c0_63], %78 {strides = array<i32>} : memref<1x224x128xf32, #tpu.memory_space<vmem>>, vector<1x224x128xf32>,
    return
  }
  func.func @transform_0(%arg0: i32, %arg1: i32, %arg2: i32) -> (i32, i32, i32) {
    %c0_i32 = arith.constant 0 : i32
    %c0_i32_0 = arith.constant 0 : i32
    %c0_i32_1 = arith.constant 0 : i32
    return %arg0, %c0_i32, %c0_i32_0 : i32, i32, i32
  }
  func.func @transform_1(%arg0: i32, %arg1: i32, %arg2: i32) -> (i32, i32, i32, i32) {
    %c0_i32 = arith.constant 0 : i32
    %c0_i32_0 = arith.constant 0 : i32
    %c0_i32_1 = arith.constant 0 : i32
    %c0_i32_2 = arith.constant 0 : i32
    return %c0_i32, %c0_i32_0, %c0_i32_1, %arg1 : i32, i32, i32, i32
  }
  func.func @transform_2(%arg0: i32, %arg1: i32, %arg2: i32) -> (i32, i32) {
    %c0_i32 = arith.constant 0 : i32
    %c0_i32_0 = arith.constant 0 : i32
    return %c0_i32, %arg1 : i32, i32
  }
  func.func @transform_3(%arg0: i32, %arg1: i32, %arg2: i32) -> (i32, i32, i32) {
    %c0_i32 = arith.constant 0 : i32
    return %arg0, %arg2, %arg1 : i32, i32, i32
  }
}

</mosaic_0001>

<llo_original>
// kernel: normal_conv2d_forward.1
$region0: #{normal_conv2d_forward.1}
  #allocation0 [shape = 'u32[]', space=smem, size = 0x4, offset = 0x4, fixed_abs, tag = 'smem constant byte address 0x4 - core index']
  #allocation1 [shape = 'u32[72,128]{1,0:T(1,128)}', space=vmem, size = 0x9000, scoped, tag = 'internal scratch']
  %s0 = inlined_call_operand.vmem [shape: f32[2,258,4], index: 0, kind: input, shape index: {}]
  %s1 = inlined_call_operand.vmem [shape: f32[3,3,4,128], index: 1, kind: input, shape index: {}]
  %s2 = inlined_call_operand.vmem [shape: f32[1,128], index: 2, kind: input, shape index: {}]
  %s3 = inlined_call_operand.vmem [shape: f32[2,224,128], index: 3, kind: output, shape index: {}]
  %s4 = sld [smem:[#allocation0]]
  $region45: #{normal_conv2d_forward.1} parent=0
    _
  %s6 = ssub.s32 1, %s4
  %s7 = scalar_select 0, %s6, %s4
  loop: start=0, step=1, limit=4
  $region2: #{normal_conv2d_forward.1} parent=0 // loop_pre_header
    _
  $region3: #{normal_conv2d_forward.1} parent=0 // loop_header
    %s9 = sphi 0, %s13
    %p10 = scmp.ge.s32.totalorder %s9, 4
    %s16 = sphi 0, %s35
    %s17 = sphi 0, %s31
    %s18 = sphi 0, %s27
    %s19 = sphi 0, %s16
    %s20 = sphi 0, %s17
    %s21 = sphi 0, %s18
    %s22 = sphi 0, %s19
    %s23 = sphi 0, %s20
    %s24 = sphi 0, %s21
    %s38 = sphi 0, %s40
    %s41 = sphi 0, %s38
    %s42 = sphi 0, %s41
    %s58 = sphi 0, %s42
    %s64 = sphi 0, %s66
    %s67 = sphi 0, %s64
    %s68 = sphi 0, %s67
    %s84 = sphi 0, %s68
    %s90 = sphi 0, %s92
    %s93 = sphi 0, %s90
    %s94 = sphi 0, %s93
    %s110 = sphi 0, %s94
    %s120 = sphi 0, %s122
    %s123 = sphi 0, %s120
    %s124 = sphi 0, %s123
    %s140 = sphi 0, %s124
  $region4: #{normal_conv2d_forward.1} parent=0 // loop_header_branch
    %12 = sbr.rel (%p10) target = $region8
  $region5: #{normal_conv2d_forward.1} parent=0 // loop_body
    %s14 = ssub.s32 %s9, 1
    %s15 = ssub.s32 %s9, 2
    %s25 = sadd.s32 1, %s18
    %p26 = scmp.ge.s32.totalorder %s25, 1
    %s27 = scalar_select %p26, 0, %s25
    %s28 = sadd.s32 1, %s17
    %s29 = scalar_select %p26, %s28, %s17
    %p30 = scmp.ge.s32.totalorder %s29, 1
    %s31 = scalar_select %p30, 0, %s29
    %s32 = sadd.s32 1, %s16
    %s33 = scalar_select %p30, %s32, %s16
    %p34 = scmp.ge.s32.totalorder %s33, 2
    %s35 = scalar_select %p34, 0, %s33
    %s36 = ssub.s32 %s16, %s35
    %p37 = scmp.eq.s32.totalorder %s36, 0
    %s39 = sadd.s32 %s38, 1
    %s40 = scalar_select %p37, %s38, %s39
    %p43 = pneg %p37
    %p44 = scmp.eq.s32.totalorder %s9, 1
    %p45 = por %p43, %p44
    %p46 = scmp.ne.s32.totalorder %s38, %s41
    %p47 = scmp.eq.s32.totalorder %s9, 0
    %p48 = por %p46, %p47
    %p49 = scmp.ne.s32.totalorder %s38, %s41
    %p50 = scmp.eq.s32.totalorder %s14, 1
    %p51 = por %p49, %p50
    %p52 = scmp.ne.s32.totalorder %s41, %s42
    %p53 = scmp.eq.s32.totalorder %s14, 0
    %p54 = por %p52, %p53
    %p55 = scmp.ne.s32.totalorder %s41, %s42
    %p56 = scmp.eq.s32.totalorder %s15, 1
    %p57 = por %p55, %p56
    %p59 = scmp.ne.s32.totalorder %s42, %s58
    %p60 = scmp.eq.s32.totalorder %s15, 0
    %p61 = por %p59, %p60
    %s62 = ssub.s32 %s17, %s31
    %p63 = scmp.eq.s32.totalorder %s62, 0
    %s65 = sadd.s32 %s64, 1
    %s66 = scalar_select %p63, %s64, %s65
    %p69 = pneg %p63
    %p70 = scmp.eq.s32.totalorder %s9, 1
    %p71 = por %p69, %p70
    %p72 = scmp.ne.s32.totalorder %s64, %s67
    %p73 = scmp.eq.s32.totalorder %s9, 0
    %p74 = por %p72, %p73
    %p75 = scmp.ne.s32.totalorder %s64, %s67
    %p76 = scmp.eq.s32.totalorder %s14, 1
    %p77 = por %p75, %p76
    %p78 = scmp.ne.s32.totalorder %s67, %s68
    %p79 = scmp.eq.s32.totalorder %s14, 0
    %p80 = por %p78, %p79
    %p81 = scmp.ne.s32.totalorder %s67, %s68
    %p82 = scmp.eq.s32.totalorder %s15, 1
    %p83 = por %p81, %p82
    %p85 = scmp.ne.s32.totalorder %s68, %s84
    %p86 = scmp.eq.s32.totalorder %s15, 0
    %p87 = por %p85, %p86
    %s88 = ssub.s32 %s17, %s31
    %p89 = scmp.eq.s32.totalorder %s88, 0
    %s91 = sadd.s32 %s90, 1
    %s92 = scalar_select %p89, %s90, %s91
    %p95 = pneg %p89
    %p96 = scmp.eq.s32.totalorder %s9, 1
    %p97 = por %p95, %p96
    %p98 = scmp.ne.s32.totalorder %s90, %s93
    %p99 = scmp.eq.s32.totalorder %s9, 0
    %p100 = por %p98, %p99
    %p101 = scmp.ne.s32.totalorder %s90, %s93
    %p102 = scmp.eq.s32.totalorder %s14, 1
    %p103 = por %p101, %p102
    %p104 = scmp.ne.s32.totalorder %s93, %s94
    %p105 = scmp.eq.s32.totalorder %s14, 0
    %p106 = por %p104, %p105
    %p107 = scmp.ne.s32.totalorder %s93, %s94
    %p108 = scmp.eq.s32.totalorder %s15, 1
    %p109 = por %p107, %p108
    %p111 = scmp.ne.s32.totalorder %s94, %s110
    %p112 = scmp.eq.s32.totalorder %s15, 0
    %p113 = por %p111, %p112
    %s114 = ssub.s32 %s16, %s35
    %s115 = ssub.s32 %s18, %s27
    %s116 = sor.u32 %s114, %s115
    %s117 = ssub.s32 %s17, %s31
    %s118 = sor.u32 %s116, %s117
    %p119 = scmp.eq.s32.totalorder %s118, 0
    %s121 = sadd.s32 %s120, 1
    %s122 = scalar_select %p119, %s120, %s121
    %p125 = pneg %p119
    %p126 = scmp.eq.s32.totalorder %s9, 1
    %p127 = por %p125, %p126
    %p128 = scmp.ne.s32.totalorder %s120, %s123
    %p129 = scmp.eq.s32.totalorder %s9, 0
    %p130 = por %p128, %p129
    %p131 = scmp.ne.s32.totalorder %s120, %s123
    %p132 = scmp.eq.s32.totalorder %s14, 1
    %p133 = por %p131, %p132
    %p134 = scmp.ne.s32.totalorder %s123, %s124
    %p135 = scmp.eq.s32.totalorder %s14, 0
    %p136 = por %p134, %p135
    %p137 = scmp.ne.s32.totalorder %s123, %s124
    %p138 = scmp.eq.s32.totalorder %s15, 1
    %p139 = por %p137, %p138
    %p141 = scmp.ne.s32.totalorder %s124, %s140
    %p142 = scmp.eq.s32.totalorder %s15, 0
    %p143 = por %p141, %p142
    %p144 = scmp.le.s32.totalorder 1, %s9
    %p145 = scmp.lt.s32.totalorder %s9, 3
    %p146 = pnand %p144, %p145
    %p147 = pneg %p146
    // Predicated region
    $region9: #{normal_conv2d_forward.1} parent=5 // pred_check
      _
    $region10: #{normal_conv2d_forward.1} parent=5 // pred_check_branch
      %149 = sbr.rel (%p146) target = $region12
    $region11: #{normal_conv2d_forward.1} parent=5 // pred_region
      %s150 = ssub.s32 %s9, 1
      // Predicated region
      $region13: #{normal_conv2d_forward.1} parent=11 // pred_check
        %p151 = pneg %p80
      $region14: #{normal_conv2d_forward.1} parent=11 // pred_check_branch
        %153 = sbr.rel (%p151) target = $region16
      $region15: #{normal_conv2d_forward.1} parent=11 // pred_region
        %p154 = scmp.lt.s32.totalorder %s20, 0
        %s155 = scalar_select %p154, %s20, 0
        %s156 = smul.addr %s155, 4
        %s157 = scalar_lea.vmem %s1, %s156
      $region16: #{normal_conv2d_forward.1} parent=11 // pred_fallthru
        _
      // Predicated region
      $region17: #{normal_conv2d_forward.1} parent=11 // pred_check
        %p158 = pneg %p106
      $region18: #{normal_conv2d_forward.1} parent=11 // pred_check_branch
        %160 = sbr.rel (%p158) target = $region20
      $region19: #{normal_conv2d_forward.1} parent=11 // pred_region
        %p161 = scmp.lt.s32.totalorder %s20, 0
        %s162 = scalar_select %p161, %s20, 0
        %s163 = scalar_lea.vmem %s2, %s162
      $region20: #{normal_conv2d_forward.1} parent=11 // pred_fallthru
        _
    $region12: #{normal_conv2d_forward.1} parent=5 // pred_fallthru
      _
    %p164 = scmp.lt.s32.totalorder %s9, 2
    // Predicated region
    $region21: #{normal_conv2d_forward.1} parent=5 // pred_check
      %p165 = pneg %p164
    $region22: #{normal_conv2d_forward.1} parent=5 // pred_check_branch
      %167 = sbr.rel (%p165) target = $region24
    $region23: #{normal_conv2d_forward.1} parent=5 // pred_region
      // Predicated region
      $region25: #{normal_conv2d_forward.1} parent=23 // pred_check
        %p168 = pneg %p48
      $region26: #{normal_conv2d_forward.1} parent=23 // pred_check_branch
        %170 = sbr.rel (%p168) target = $region28
      $region27: #{normal_conv2d_forward.1} parent=23 // pred_region
        %p171 = scmp.lt.s32.totalorder %s16, 1
        %s172 = scalar_select %p171, %s16, 1
        %s173 = smul.addr %s172, 33
        %s174 = smul.addr %s173, 8
        %s175 = scalar_lea.vmem %s0, %s174
      $region28: #{normal_conv2d_forward.1} parent=23 // pred_fallthru
        _
    $region24: #{normal_conv2d_forward.1} parent=5 // pred_fallthru
      _
    %p176 = scmp.le.s32.totalorder 1, %s9
    %p177 = scmp.lt.s32.totalorder %s9, 3
    %p178 = pnand %p176, %p177
    %p179 = pneg %p178
    // Predicated region
    $region29: #{normal_conv2d_forward.1} parent=5 // pred_check
      _
    $region30: #{normal_conv2d_forward.1} parent=5 // pred_check_branch
      %181 = sbr.rel (%p178) target = $region32
    $region31: #{normal_conv2d_forward.1} parent=5 // pred_region
      %s182 = ssub.s32 %s9, 1
      %p183 = scmp.lt.s32.totalorder %s19, 1
      %s184 = scalar_select %p183, %s19, 1
      %s185 = smul.addr %s184, 33
      %s186 = smul.addr %s185, 8
      %s187 = scalar_lea.vmem %s0, %s186
      %p188 = pneg %p54
      %p189 = pneg %p51
      %p190 = scmp.lt.s32.totalorder %s20, 0
      %s191 = scalar_select %p190, %s20, 0
      %s192 = smul.addr %s191, 4
      %s193 = scalar_lea.vmem %s1, %s192
      %p194 = pneg %p80
      %p195 = pneg %p77
      %p196 = scmp.lt.s32.totalorder %s20, 0
      %s197 = scalar_select %p196, %s20, 0
      %s198 = scalar_lea.vmem %s2, %s197
      %p199 = pneg %p106
      %p200 = pneg %p103
      %p201 = pneg %p136
      %p202 = pneg %p133
      %s203 = smul.u32 28, %s21
      %p204 = scmp.lt.s32.totalorder %s19, 1
      %s205 = scalar_select %p204, %s19, 1
      %p206 = scmp.lt.s32.totalorder %s203, 27
      %s207 = scalar_select %p206, %s203, 27
      %p208 = scmp.lt.s32.totalorder %s20, 0
      %s209 = scalar_select %p208, %s20, 0
      %s210 = sadd.s32 %s209, %s207
      %s211 = smul.addr %s205, 28
      %s212 = sadd.s32 %s210, %s211
      %s213 = smul.addr %s212, 8
      %s214 = scalar_lea.vmem %s3, %s213
      %p215 = scmp.lt.s32.totalorder %s19, 1
      %s216 = scalar_select %p215, %s19, 1
      %s217 = smul.addr %s216, 33
      %s218 = smul.addr %s217, 8
      %s219 = scalar_lea.vmem %s0, %s218
      %p220 = scmp.lt.s32.totalorder %s20, 0
      %s221 = scalar_select %p220, %s20, 0
      %s222 = smul.addr %s221, 4
      %s223 = scalar_lea.vmem %s1, %s222
      %p224 = scmp.lt.s32.totalorder %s20, 0
      %s225 = scalar_select %p224, %s20, 0
      %s226 = scalar_lea.vmem %s2, %s225
      %s227 = smul.u32 28, %s21
      %p228 = scmp.lt.s32.totalorder %s19, 1
      %s229 = scalar_select %p228, %s19, 1
      %p230 = scmp.lt.s32.totalorder %s227, 27
      %s231 = scalar_select %p230, %s227, 27
      %p232 = scmp.lt.s32.totalorder %s20, 0
      %s233 = scalar_select %p232, %s20, 0
      %s234 = sadd.s32 %s233, %s231
      %s235 = smul.addr %s229, 28
      %s236 = sadd.s32 %s234, %s235
      %s237 = smul.addr %s236, 8
      %s238 = scalar_lea.vmem %s3, %s237
      %s239 = smul.u32 28, %s21
      %s240 = smul.u32 %s21, 224
      %v241 = vld [vmem:[%s226] sm:$0x1]
      %v243 = vperm.slane %v241, 0
      %s245 = scalar_lea.vmem %s219, %s240
      %v246 = vld [vmem:[%s245] sm:$0xff]
      %v247 = vld [vmem:[%s245 + $0x8] sm:$0xff]
      %v248 = vld [vmem:[%s245 + $0x10] sm:$0xff]
      %v249 = vld [vmem:[%s245 + $0x18] sm:$0xff]
      %v250 = vld [vmem:[%s245 + $0x20] sm:$0xff]
      %v251 = vld [vmem:[%s245 + $0x28] sm:$0xff]
      %v252 = vld [vmem:[%s245 + $0x30] sm:$0xff]
      %v253 = vld [vmem:[%s245 + $0x38] sm:$0xff]
      %v254 = vld [vmem:[%s245 + $0x40] sm:$0xff]
      %v255 = vld [vmem:[%s245 + $0x48] sm:$0xff]
      %v256 = vld [vmem:[%s245 + $0x50] sm:$0xff]
      %v257 = vld [vmem:[%s245 + $0x58] sm:$0xff]
      %v258 = vld [vmem:[%s245 + $0x60] sm:$0xff]
      %v259 = vld [vmem:[%s245 + $0x68] sm:$0xff]
      %v260 = vld [vmem:[%s245 + $0x70] sm:$0xff]
      %v261 = vld [vmem:[%s245 + $0x78] sm:$0xff]
      %v262 = vld [vmem:[%s245 + $0x80] sm:$0xff]
      %v263 = vld [vmem:[%s245 + $0x88] sm:$0xff]
      %v264 = vld [vmem:[%s245 + $0x90] sm:$0xff]
      %v265 = vld [vmem:[%s245 + $0x98] sm:$0xff]
      %v266 = vld [vmem:[%s245 + $0xa0] sm:$0xff]
      %v267 = vld [vmem:[%s245 + $0xa8] sm:$0xff]
      %v268 = vld [vmem:[%s245 + $0xb0] sm:$0xff]
      %v269 = vld [vmem:[%s245 + $0xb8] sm:$0xff]
      %v270 = vld [vmem:[%s245 + $0xc0] sm:$0xff]
      %v271 = vld [vmem:[%s245 + $0xc8] sm:$0xff]
      %v272 = vld [vmem:[%s245 + $0xd0] sm:$0xff]
      %v273 = vld [vmem:[%s245 + $0xd8] sm:$0xff]
      %v274 = vld [vmem:[%s223] sm:$0xf]
      %vm275 = vcmask 31744
      %v277 = vsel %vm275, %v246, 0
      %v280 = vsel %vm275, %v247, 0
      %v283 = vsel %vm275, %v248, 0
      %v286 = vsel %vm275, %v249, 0
      %v289 = vsel %vm275, %v250, 0
      %v292 = vsel %vm275, %v251, 0
      %v295 = vsel %vm275, %v252, 0
      %v298 = vsel %vm275, %v253, 0
      %v301 = vsel %vm275, %v254, 0
      %v304 = vsel %vm275, %v255, 0
      %v307 = vsel %vm275, %v256, 0
      %v310 = vsel %vm275, %v257, 0
      %v313 = vsel %vm275, %v258, 0
      %v316 = vsel %vm275, %v259, 0
      %v319 = vsel %vm275, %v260, 0
      %v322 = vsel %vm275, %v261, 0
      %v325 = vsel %vm275, %v262, 0
      %v328 = vsel %vm275, %v263, 0
      %v331 = vsel %vm275, %v264, 0
      %v334 = vsel %vm275, %v265, 0
      %v337 = vsel %vm275, %v266, 0
      %v340 = vsel %vm275, %v267, 0
      %v343 = vsel %vm275, %v268, 0
      %v346 = vsel %vm275, %v269, 0
      %v349 = vsel %vm275, %v270, 0
      %v352 = vsel %vm275, %v271, 0
      %v355 = vsel %vm275, %v272, 0
      %v358 = vsel %vm275, %v273, 0
      %vm360 = vcmask 1043456
      %v362 = vsel %vm360, %v274, 0
      %364 = vmatpush.msra.mxu0 0.0
      %365 = vmatpush.msra.mxu0 0.0
      %366 = vmatpush.msra.mxu0 0.0
      %367 = vmatpush.msra.mxu0 0.0
      %368 = vmatpush.msra.mxu0 0.0
      %369 = vmatpush.msra.mxu0 0.0
      %370 = vmatpush.msra.mxu0 0.0
      %371 = vmatpush.msra.mxu0 0.0
      %372 = vmatpush.msra.mxu0 0.0
      %373 = vmatpush.msra.mxu0 0.0
      %374 = vmatpush.msra.mxu0 0.0
      %375 = vmatpush.msra.mxu0 0.0
      %376 = vmatpush.msra.mxu0 0.0
      %377 = vmatpush.msra.mxu0 0.0
      %378 = vmatpush.msra.mxu0 0.0
      %379 = vmatpush.msra.mxu0 %v362
      %380 = vmatmul.f32.gmra.mxu0 %v277
      %v381 = vpop.f32.mrf.mxu0
      %v382 = vadd.f32 0.0, %v381
      %383 = vmatmul.f32.gmra.mxu0 %v280
      %v384 = vpop.f32.mrf.mxu0
      %v385 = vadd.f32 0.0, %v384
      %386 = vmatmul.f32.gmra.mxu0 %v283
      %v387 = vpop.f32.mrf.mxu0
      %v388 = vadd.f32 0.0, %v387
      %389 = vmatmul.f32.gmra.mxu0 %v286
      %v390 = vpop.f32.mrf.mxu0
      %v391 = vadd.f32 0.0, %v390
      %392 = vmatmul.f32.gmra.mxu0 %v289
      %v393 = vpop.f32.mrf.mxu0
      %v394 = vadd.f32 0.0, %v393
      %395 = vmatmul.f32.gmra.mxu0 %v292
      %v396 = vpop.f32.mrf.mxu0
      %v397 = vadd.f32 0.0, %v396
      %398 = vmatmul.f32.gmra.mxu0 %v295
      %v399 = vpop.f32.mrf.mxu0
      %v400 = vadd.f32 0.0, %v399
      %401 = vmatmul.f32.gmra.mxu0 %v298
      %v402 = vpop.f32.mrf.mxu0
      %v403 = vadd.f32 0.0, %v402
      %404 = vmatmul.f32.gmra.mxu0 %v301
      %v405 = vpop.f32.mrf.mxu0
      %v406 = vadd.f32 0.0, %v405
      %407 = vmatmul.f32.gmra.mxu0 %v304
      %v408 = vpop.f32.mrf.mxu0
      %v409 = vadd.f32 0.0, %v408
      %410 = vmatmul.f32.gmra.mxu0 %v307
      %v411 = vpop.f32.mrf.mxu0
      %v412 = vadd.f32 0.0, %v411
      %413 = vmatmul.f32.gmra.mxu0 %v310
      %v414 = vpop.f32.mrf.mxu0
      %v415 = vadd.f32 0.0, %v414
      %416 = vmatmul.f32.gmra.mxu0 %v313
      %v417 = vpop.f32.mrf.mxu0
      %v418 = vadd.f32 0.0, %v417
      %419 = vmatmul.f32.gmra.mxu0 %v316
      %v420 = vpop.f32.mrf.mxu0
      %v421 = vadd.f32 0.0, %v420
      %422 = vmatmul.f32.gmra.mxu0 %v319
      %v423 = vpop.f32.mrf.mxu0
      %v424 = vadd.f32 0.0, %v423
      %425 = vmatmul.f32.gmra.mxu0 %v322
      %v426 = vpop.f32.mrf.mxu0
      %v427 = vadd.f32 0.0, %v426
      %428 = vmatmul.f32.gmra.mxu0 %v325
      %v429 = vpop.f32.mrf.mxu0
      %v430 = vadd.f32 0.0, %v429
      %431 = vmatmul.f32.gmra.mxu0 %v328
      %v432 = vpop.f32.mrf.mxu0
      %v433 = vadd.f32 0.0, %v432
      %434 = vmatmul.f32.gmra.mxu0 %v331
      %v435 = vpop.f32.mrf.mxu0
      %v436 = vadd.f32 0.0, %v435
      %437 = vmatmul.f32.gmra.mxu0 %v334
      %v438 = vpop.f32.mrf.mxu0
      %v439 = vadd.f32 0.0, %v438
      %440 = vmatmul.f32.gmra.mxu0 %v337
      %v441 = vpop.f32.mrf.mxu0
      %v442 = vadd.f32 0.0, %v441
      %443 = vmatmul.f32.gmra.mxu0 %v340
      %v444 = vpop.f32.mrf.mxu0
      %v445 = vadd.f32 0.0, %v444
      %446 = vmatmul.f32.gmra.mxu0 %v343
      %v447 = vpop.f32.mrf.mxu0
      %v448 = vadd.f32 0.0, %v447
      %449 = vmatmul.f32.gmra.mxu0 %v346
      %v450 = vpop.f32.mrf.mxu0
      %v451 = vadd.f32 0.0, %v450
      %452 = vmatmul.f32.gmra.mxu0 %v349
      %v453 = vpop.f32.mrf.mxu0
      %v454 = vadd.f32 0.0, %v453
      %455 = vmatmul.f32.gmra.mxu0 %v352
      %v456 = vpop.f32.mrf.mxu0
      %v457 = vadd.f32 0.0, %v456
      %458 = vmatmul.f32.gmra.mxu0 %v355
      %v459 = vpop.f32.mrf.mxu0
      %v460 = vadd.f32 0.0, %v459
      %461 = vmatmul.f32.gmra.mxu0 %v358
      %v462 = vpop.f32.mrf.mxu0
      %v463 = vadd.f32 0.0, %v462
      %464 = vdwg.mxu0
      %v465 = vadd.f32 %v243, %v382
      %v466 = vadd.f32 %v243, %v385
      %v467 = vadd.f32 %v243, %v388
      %v468 = vadd.f32 %v243, %v391
      %v469 = vadd.f32 %v243, %v394
      %v470 = vadd.f32 %v243, %v397
      %v471 = vadd.f32 %v243, %v400
      %v472 = vadd.f32 %v243, %v403
      %v473 = vadd.f32 %v243, %v406
      %v474 = vadd.f32 %v243, %v409
      %v475 = vadd.f32 %v243, %v412
      %v476 = vadd.f32 %v243, %v415
      %v477 = vadd.f32 %v243, %v418
      %v478 = vadd.f32 %v243, %v421
      %v479 = vadd.f32 %v243, %v424
      %v480 = vadd.f32 %v243, %v427
      %v481 = vadd.f32 %v243, %v430
      %v482 = vadd.f32 %v243, %v433
      %v483 = vadd.f32 %v243, %v436
      %v484 = vadd.f32 %v243, %v439
      %v485 = vadd.f32 %v243, %v442
      %v486 = vadd.f32 %v243, %v445
      %v487 = vadd.f32 %v243, %v448
      %v488 = vadd.f32 %v243, %v451
      %v489 = vadd.f32 %v243, %v454
      %v490 = vadd.f32 %v243, %v457
      %v491 = vadd.f32 %v243, %v460
      %v492 = vadd.f32 %v243, %v463
      %s493 = sadd.s32 %s240, 1
      %s494 = scalar_lea.vmem %s219, %s493
      %v495 = vld [vmem:[%s494] sm:$0xff]
      %v496 = vld [vmem:[%s494 + $0x8] sm:$0xff]
      %v497 = vld [vmem:[%s494 + $0x10] sm:$0xff]
      %v498 = vld [vmem:[%s494 + $0x18] sm:$0xff]
      %v499 = vld [vmem:[%s494 + $0x20] sm:$0xff]
      %v500 = vld [vmem:[%s494 + $0x28] sm:$0xff]
      %v501 = vld [vmem:[%s494 + $0x30] sm:$0xff]
      %v502 = vld [vmem:[%s494 + $0x38] sm:$0xff]
      %v503 = vld [vmem:[%s494 + $0x40] sm:$0xff]
      %v504 = vld [vmem:[%s494 + $0x48] sm:$0xff]
      %v505 = vld [vmem:[%s494 + $0x50] sm:$0xff]
      %v506 = vld [vmem:[%s494 + $0x58] sm:$0xff]
      %v507 = vld [vmem:[%s494 + $0x60] sm:$0xff]
      %v508 = vld [vmem:[%s494 + $0x68] sm:$0xff]
      %v509 = vld [vmem:[%s494 + $0x70] sm:$0xff]
      %v510 = vld [vmem:[%s494 + $0x78] sm:$0xff]
      %v511 = vld [vmem:[%s494 + $0x80] sm:$0xff]
      %v512 = vld [vmem:[%s494 + $0x88] sm:$0xff]
      %v513 = vld [vmem:[%s494 + $0x90] sm:$0xff]
      %v514 = vld [vmem:[%s494 + $0x98] sm:$0xff]
      %v515 = vld [vmem:[%s494 + $0xa0] sm:$0xff]
      %v516 = vld [vmem:[%s494 + $0xa8] sm:$0xff]
      %v517 = vld [vmem:[%s494 + $0xb0] sm:$0xff]
      %v518 = vld [vmem:[%s494 + $0xb8] sm:$0xff]
      %v519 = vld [vmem:[%s494 + $0xc0] sm:$0xff]
      %v520 = vld [vmem:[%s494 + $0xc8] sm:$0xff]
      %v521 = vld [vmem:[%s494 + $0xd0] sm:$0xff]
      %v522 = vld [vmem:[%s494 + $0xd8] sm:$0xff]
      %s523 = scalar_lea.vmem %s223, 4
      %v524 = vld [vmem:[%s523] sm:$0xf]
      %v526 = vsel %vm275, %v495, 0
      %v529 = vsel %vm275, %v496, 0
      %v532 = vsel %vm275, %v497, 0
      %v535 = vsel %vm275, %v498, 0
      %v538 = vsel %vm275, %v499, 0
      %v541 = vsel %vm275, %v500, 0
      %v544 = vsel %vm275, %v501, 0
      %v547 = vsel %vm275, %v502, 0
      %v550 = vsel %vm275, %v503, 0
      %v553 = vsel %vm275, %v504, 0
      %v556 = vsel %vm275, %v505, 0
      %v559 = vsel %vm275, %v506, 0
      %v562 = vsel %vm275, %v507, 0
      %v565 = vsel %vm275, %v508, 0
      %v568 = vsel %vm275, %v509, 0
      %v571 = vsel %vm275, %v510, 0
      %v574 = vsel %vm275, %v511, 0
      %v577 = vsel %vm275, %v512, 0
      %v580 = vsel %vm275, %v513, 0
      %v583 = vsel %vm275, %v514, 0
      %v586 = vsel %vm275, %v515, 0
      %v589 = vsel %vm275, %v516, 0
      %v592 = vsel %vm275, %v517, 0
      %v595 = vsel %vm275, %v518, 0
      %v598 = vsel %vm275, %v519, 0
      %v601 = vsel %vm275, %v520, 0
      %v604 = vsel %vm275, %v521, 0
      %v607 = vsel %vm275, %v522, 0
      %v610 = vsel %vm360, %v524, 0
      %612 = vmatpush.msra.mxu0 0.0
      %613 = vmatpush.msra.mxu0 0.0
      %614 = vmatpush.msra.mxu0 0.0
      %615 = vmatpush.msra.mxu0 0.0
      %616 = vmatpush.msra.mxu0 0.0
      %617 = vmatpush.msra.mxu0 0.0
      %618 = vmatpush.msra.mxu0 0.0
      %619 = vmatpush.msra.mxu0 0.0
      %620 = vmatpush.msra.mxu0 0.0
      %621 = vmatpush.msra.mxu0 0.0
      %622 = vmatpush.msra.mxu0 0.0
      %623 = vmatpush.msra.mxu0 0.0
      %624 = vmatpush.msra.mxu0 0.0
      %625 = vmatpush.msra.mxu0 0.0
      %626 = vmatpush.msra.mxu0 0.0
      %627 = vmatpush.msra.mxu0 %v610
      %628 = vmatmul.f32.gmra.mxu0 %v526
      %v629 = vpop.f32.mrf.mxu0
      %v630 = vadd.f32 0.0, %v629
      %631 = vmatmul.f32.gmra.mxu0 %v529
      %v632 = vpop.f32.mrf.mxu0
      %v633 = vadd.f32 0.0, %v632
      %634 = vmatmul.f32.gmra.mxu0 %v532
      %v635 = vpop.f32.mrf.mxu0
      %v636 = vadd.f32 0.0, %v635
      %637 = vmatmul.f32.gmra.mxu0 %v535
      %v638 = vpop.f32.mrf.mxu0
      %v639 = vadd.f32 0.0, %v638
      %640 = vmatmul.f32.gmra.mxu0 %v538
      %v641 = vpop.f32.mrf.mxu0
      %v642 = vadd.f32 0.0, %v641
      %643 = vmatmul.f32.gmra.mxu0 %v541
      %v644 = vpop.f32.mrf.mxu0
      %v645 = vadd.f32 0.0, %v644
      %646 = vmatmul.f32.gmra.mxu0 %v544
      %v647 = vpop.f32.mrf.mxu0
      %v648 = vadd.f32 0.0, %v647
      %649 = vmatmul.f32.gmra.mxu0 %v547
      %v650 = vpop.f32.mrf.mxu0
      %v651 = vadd.f32 0.0, %v650
      %652 = vmatmul.f32.gmra.mxu0 %v550
      %v653 = vpop.f32.mrf.mxu0
      %v654 = vadd.f32 0.0, %v653
      %655 = vmatmul.f32.gmra.mxu0 %v553
      %v656 = vpop.f32.mrf.mxu0
      %v657 = vadd.f32 0.0, %v656
      %658 = vmatmul.f32.gmra.mxu0 %v556
      %v659 = vpop.f32.mrf.mxu0
      %v660 = vadd.f32 0.0, %v659
      %661 = vmatmul.f32.gmra.mxu0 %v559
      %v662 = vpop.f32.mrf.mxu0
      %v663 = vadd.f32 0.0, %v662
      %664 = vmatmul.f32.gmra.mxu0 %v562
      %v665 = vpop.f32.mrf.mxu0
      %v666 = vadd.f32 0.0, %v665
      %667 = vmatmul.f32.gmra.mxu0 %v565
      %v668 = vpop.f32.mrf.mxu0
      %v669 = vadd.f32 0.0, %v668
      %670 = vmatmul.f32.gmra.mxu0 %v568
      %v671 = vpop.f32.mrf.mxu0
      %v672 = vadd.f32 0.0, %v671
      %673 = vmatmul.f32.gmra.mxu0 %v571
      %v674 = vpop.f32.mrf.mxu0
      %v675 = vadd.f32 0.0, %v674
      %676 = vmatmul.f32.gmra.mxu0 %v574
      %v677 = vpop.f32.mrf.mxu0
      %v678 = vadd.f32 0.0, %v677
      %679 = vmatmul.f32.gmra.mxu0 %v577
      %v680 = vpop.f32.mrf.mxu0
      %v681 = vadd.f32 0.0, %v680
      %682 = vmatmul.f32.gmra.mxu0 %v580
      %v683 = vpop.f32.mrf.mxu0
      %v684 = vadd.f32 0.0, %v683
      %685 = vmatmul.f32.gmra.mxu0 %v583
      %v686 = vpop.f32.mrf.mxu0
      %v687 = vadd.f32 0.0, %v686
      %688 = vmatmul.f32.gmra.mxu0 %v586
      %v689 = vpop.f32.mrf.mxu0
      %v690 = vadd.f32 0.0, %v689
      %691 = vmatmul.f32.gmra.mxu0 %v589
      %v692 = vpop.f32.mrf.mxu0
      %v693 = vadd.f32 0.0, %v692
      %694 = vmatmul.f32.gmra.mxu0 %v592
      %v695 = vpop.f32.mrf.mxu0
      %v696 = vadd.f32 0.0, %v695
      %697 = vmatmul.f32.gmra.mxu0 %v595
      %v698 = vpop.f32.mrf.mxu0
      %v699 = vadd.f32 0.0, %v698
      %700 = vmatmul.f32.gmra.mxu0 %v598
      %v701 = vpop.f32.mrf.mxu0
      %v702 = vadd.f32 0.0, %v701
      %703 = vmatmul.f32.gmra.mxu0 %v601
      %v704 = vpop.f32.mrf.mxu0
      %v705 = vadd.f32 0.0, %v704
      %706 = vmatmul.f32.gmra.mxu0 %v604
      %v707 = vpop.f32.mrf.mxu0
      %v708 = vadd.f32 0.0, %v707
      %709 = vmatmul.f32.gmra.mxu0 %v607
      %v710 = vpop.f32.mrf.mxu0
      %v711 = vadd.f32 0.0, %v710
      %712 = vdwg.mxu0
      %v713 = vadd.f32 %v465, %v630
      %v714 = vadd.f32 %v466, %v633
      %v715 = vadd.f32 %v467, %v636
      %v716 = vadd.f32 %v468, %v639
      %v717 = vadd.f32 %v469, %v642
      %v718 = vadd.f32 %v470, %v645
      %v719 = vadd.f32 %v471, %v648
      %v720 = vadd.f32 %v472, %v651
      %v721 = vadd.f32 %v473, %v654
      %v722 = vadd.f32 %v474, %v657
      %v723 = vadd.f32 %v475, %v660
      %v724 = vadd.f32 %v476, %v663
      %v725 = vadd.f32 %v477, %v666
      %v726 = vadd.f32 %v478, %v669
      %v727 = vadd.f32 %v479, %v672
      %v728 = vadd.f32 %v480, %v675
      %v729 = vadd.f32 %v481, %v678
      %v730 = vadd.f32 %v482, %v681
      %v731 = vadd.f32 %v483, %v684
      %v732 = vadd.f32 %v484, %v687
      %v733 = vadd.f32 %v485, %v690
      %v734 = vadd.f32 %v486, %v693
      %v735 = vadd.f32 %v487, %v696
      %v736 = vadd.f32 %v488, %v699
      %v737 = vadd.f32 %v489, %v702
      %v738 = vadd.f32 %v490, %v705
      %v739 = vadd.f32 %v491, %v708
      %v740 = vadd.f32 %v492, %v711
      %s741 = sadd.s32 %s240, 2
      %s742 = scalar_lea.vmem %s219, %s741
      %v743 = vld [vmem:[%s742] sm:$0xff]
      %v744 = vld [vmem:[%s742 + $0x8] sm:$0xff]
      %v745 = vld [vmem:[%s742 + $0x10] sm:$0xff]
      %v746 = vld [vmem:[%s742 + $0x18] sm:$0xff]
      %v747 = vld [vmem:[%s742 + $0x20] sm:$0xff]
      %v748 = vld [vmem:[%s742 + $0x28] sm:$0xff]
      %v749 = vld [vmem:[%s742 + $0x30] sm:$0xff]
      %v750 = vld [vmem:[%s742 + $0x38] sm:$0xff]
      %v751 = vld [vmem:[%s742 + $0x40] sm:$0xff]
      %v752 = vld [vmem:[%s742 + $0x48] sm:$0xff]
      %v753 = vld [vmem:[%s742 + $0x50] sm:$0xff]
      %v754 = vld [vmem:[%s742 + $0x58] sm:$0xff]
      %v755 = vld [vmem:[%s742 + $0x60] sm:$0xff]
      %v756 = vld [vmem:[%s742 + $0x68] sm:$0xff]
      %v757 = vld [vmem:[%s742 + $0x70] sm:$0xff]
      %v758 = vld [vmem:[%s742 + $0x78] sm:$0xff]
      %v759 = vld [vmem:[%s742 + $0x80] sm:$0xff]
      %v760 = vld [vmem:[%s742 + $0x88] sm:$0xff]
      %v761 = vld [vmem:[%s742 + $0x90] sm:$0xff]
      %v762 = vld [vmem:[%s742 + $0x98] sm:$0xff]
      %v763 = vld [vmem:[%s742 + $0xa0] sm:$0xff]
      %v764 = vld [vmem:[%s742 + $0xa8] sm:$0xff]
      %v765 = vld [vmem:[%s742 + $0xb0] sm:$0xff]
      %v766 = vld [vmem:[%s742 + $0xb8] sm:$0xff]
      %v767 = vld [vmem:[%s742 + $0xc0] sm:$0xff]
      %v768 = vld [vmem:[%s742 + $0xc8] sm:$0xff]
      %v769 = vld [vmem:[%s742 + $0xd0] sm:$0xff]
      %v770 = vld [vmem:[%s742 + $0xd8] sm:$0xff]
      %s771 = scalar_lea.vmem %s223, 8
      %v772 = vld [vmem:[%s771] sm:$0xf]
      %v774 = vsel %vm275, %v743, 0
      %v777 = vsel %vm275, %v744, 0
      %v780 = vsel %vm275, %v745, 0
      %v783 = vsel %vm275, %v746, 0
      %v786 = vsel %vm275, %v747, 0
      %v789 = vsel %vm275, %v748, 0
      %v792 = vsel %vm275, %v749, 0
      %v795 = vsel %vm275, %v750, 0
      %v798 = vsel %vm275, %v751, 0
      %v801 = vsel %vm275, %v752, 0
      %v804 = vsel %vm275, %v753, 0
      %v807 = vsel %vm275, %v754, 0
      %v810 = vsel %vm275, %v755, 0
      %v813 = vsel %vm275, %v756, 0
      %v816 = vsel %vm275, %v757, 0
      %v819 = vsel %vm275, %v758, 0
      %v822 = vsel %vm275, %v759, 0
      %v825 = vsel %vm275, %v760, 0
      %v828 = vsel %vm275, %v761, 0
      %v831 = vsel %vm275, %v762, 0
      %v834 = vsel %vm275, %v763, 0
      %v837 = vsel %vm275, %v764, 0
      %v840 = vsel %vm275, %v765, 0
      %v843 = vsel %vm275, %v766, 0
      %v846 = vsel %vm275, %v767, 0
      %v849 = vsel %vm275, %v768, 0
      %v852 = vsel %vm275, %v769, 0
      %v855 = vsel %vm275, %v770, 0
      %v858 = vsel %vm360, %v772, 0
      %860 = vmatpush.msra.mxu0 0.0
      %861 = vmatpush.msra.mxu0 0.0
      %862 = vmatpush.msra.mxu0 0.0
      %863 = vmatpush.msra.mxu0 0.0
      %864 = vmatpush.msra.mxu0 0.0
      %865 = vmatpush.msra.mxu0 0.0
      %866 = vmatpush.msra.mxu0 0.0
      %867 = vmatpush.msra.mxu0 0.0
      %868 = vmatpush.msra.mxu0 0.0
      %869 = vmatpush.msra.mxu0 0.0
      %870 = vmatpush.msra.mxu0 0.0
      %871 = vmatpush.msra.mxu0 0.0
      %872 = vmatpush.msra.mxu0 0.0
      %873 = vmatpush.msra.mxu0 0.0
      %874 = vmatpush.msra.mxu0 0.0
      %875 = vmatpush.msra.mxu0 %v858
      %876 = vmatmul.f32.gmra.mxu0 %v774
      %v877 = vpop.f32.mrf.mxu0
      %v878 = vadd.f32 0.0, %v877
      %879 = vmatmul.f32.gmra.mxu0 %v777
      %v880 = vpop.f32.mrf.mxu0
      %v881 = vadd.f32 0.0, %v880
      %882 = vmatmul.f32.gmra.mxu0 %v780
      %v883 = vpop.f32.mrf.mxu0
      %v884 = vadd.f32 0.0, %v883
      %885 = vmatmul.f32.gmra.mxu0 %v783
      %v886 = vpop.f32.mrf.mxu0
      %v887 = vadd.f32 0.0, %v886
      %888 = vmatmul.f32.gmra.mxu0 %v786
      %v889 = vpop.f32.mrf.mxu0
      %v890 = vadd.f32 0.0, %v889
      %891 = vmatmul.f32.gmra.mxu0 %v789
      %v892 = vpop.f32.mrf.mxu0
      %v893 = vadd.f32 0.0, %v892
      %894 = vmatmul.f32.gmra.mxu0 %v792
      %v895 = vpop.f32.mrf.mxu0
      %v896 = vadd.f32 0.0, %v895
      %897 = vmatmul.f32.gmra.mxu0 %v795
      %v898 = vpop.f32.mrf.mxu0
      %v899 = vadd.f32 0.0, %v898
      %900 = vmatmul.f32.gmra.mxu0 %v798
      %v901 = vpop.f32.mrf.mxu0
      %v902 = vadd.f32 0.0, %v901
      %903 = vmatmul.f32.gmra.mxu0 %v801
      %v904 = vpop.f32.mrf.mxu0
      %v905 = vadd.f32 0.0, %v904
      %906 = vmatmul.f32.gmra.mxu0 %v804
      %v907 = vpop.f32.mrf.mxu0
      %v908 = vadd.f32 0.0, %v907
      %909 = vmatmul.f32.gmra.mxu0 %v807
      %v910 = vpop.f32.mrf.mxu0
      %v911 = vadd.f32 0.0, %v910
      %912 = vmatmul.f32.gmra.mxu0 %v810
      %v913 = vpop.f32.mrf.mxu0
      %v914 = vadd.f32 0.0, %v913
      %915 = vmatmul.f32.gmra.mxu0 %v813
      %v916 = vpop.f32.mrf.mxu0
      %v917 = vadd.f32 0.0, %v916
      %918 = vmatmul.f32.gmra.mxu0 %v816
      %v919 = vpop.f32.mrf.mxu0
      %v920 = vadd.f32 0.0, %v919
      %921 = vmatmul.f32.gmra.mxu0 %v819
      %v922 = vpop.f32.mrf.mxu0
      %v923 = vadd.f32 0.0, %v922
      %924 = vmatmul.f32.gmra.mxu0 %v822
      %v925 = vpop.f32.mrf.mxu0
      %v926 = vadd.f32 0.0, %v925
      %927 = vmatmul.f32.gmra.mxu0 %v825
      %v928 = vpop.f32.mrf.mxu0
      %v929 = vadd.f32 0.0, %v928
      %930 = vmatmul.f32.gmra.mxu0 %v828
      %v931 = vpop.f32.mrf.mxu0
      %v932 = vadd.f32 0.0, %v931
      %933 = vmatmul.f32.gmra.mxu0 %v831
      %v934 = vpop.f32.mrf.mxu0
      %v935 = vadd.f32 0.0, %v934
      %936 = vmatmul.f32.gmra.mxu0 %v834
      %v937 = vpop.f32.mrf.mxu0
      %v938 = vadd.f32 0.0, %v937
      %939 = vmatmul.f32.gmra.mxu0 %v837
      %v940 = vpop.f32.mrf.mxu0
      %v941 = vadd.f32 0.0, %v940
      %942 = vmatmul.f32.gmra.mxu0 %v840
      %v943 = vpop.f32.mrf.mxu0
      %v944 = vadd.f32 0.0, %v943
      %945 = vmatmul.f32.gmra.mxu0 %v843
      %v946 = vpop.f32.mrf.mxu0
      %v947 = vadd.f32 0.0, %v946
      %948 = vmatmul.f32.gmra.mxu0 %v846
      %v949 = vpop.f32.mrf.mxu0
      %v950 = vadd.f32 0.0, %v949
      %951 = vmatmul.f32.gmra.mxu0 %v849
      %v952 = vpop.f32.mrf.mxu0
      %v953 = vadd.f32 0.0, %v952
      %954 = vmatmul.f32.gmra.mxu0 %v852
      %v955 = vpop.f32.mrf.mxu0
      %v956 = vadd.f32 0.0, %v955
      %957 = vmatmul.f32.gmra.mxu0 %v855
      %v958 = vpop.f32.mrf.mxu0
      %v959 = vadd.f32 0.0, %v958
      %960 = vdwg.mxu0
      %v961 = vadd.f32 %v713, %v878
      %v962 = vadd.f32 %v714, %v881
      %v963 = vadd.f32 %v715, %v884
      %v964 = vadd.f32 %v716, %v887
      %v965 = vadd.f32 %v717, %v890
      %v966 = vadd.f32 %v718, %v893
      %v967 = vadd.f32 %v719, %v896
      %v968 = vadd.f32 %v720, %v899
      %v969 = vadd.f32 %v721, %v902
      %v970 = vadd.f32 %v722, %v905
      %v971 = vadd.f32 %v723, %v908
      %v972 = vadd.f32 %v724, %v911
      %v973 = vadd.f32 %v725, %v914
      %v974 = vadd.f32 %v726, %v917
      %v975 = vadd.f32 %v727, %v920
      %v976 = vadd.f32 %v728, %v923
      %v977 = vadd.f32 %v729, %v926
      %v978 = vadd.f32 %v730, %v929
      %v979 = vadd.f32 %v731, %v932
      %v980 = vadd.f32 %v732, %v935
      %v981 = vadd.f32 %v733, %v938
      %v982 = vadd.f32 %v734, %v941
      %v983 = vadd.f32 %v735, %v944
      %v984 = vadd.f32 %v736, %v947
      %v985 = vadd.f32 %v737, %v950
      %v986 = vadd.f32 %v738, %v953
      %v987 = vadd.f32 %v739, %v956
      %v988 = vadd.f32 %v740, %v959
      %s989 = sadd.s32 %s240, 16
      %s990 = scalar_lea.vmem %s219, %s989
      %v991 = vld [vmem:[%s990] sm:$0xff]
      %v992 = vld [vmem:[%s990 + $0x8] sm:$0xff]
      %v993 = vld [vmem:[%s990 + $0x10] sm:$0xff]
      %v994 = vld [vmem:[%s990 + $0x18] sm:$0xff]
      %v995 = vld [vmem:[%s990 + $0x20] sm:$0xff]
      %v996 = vld [vmem:[%s990 + $0x28] sm:$0xff]
      %v997 = vld [vmem:[%s990 + $0x30] sm:$0xff]
      %v998 = vld [vmem:[%s990 + $0x38] sm:$0xff]
      %v999 = vld [vmem:[%s990 + $0x40] sm:$0xff]
      %v1000 = vld [vmem:[%s990 + $0x48] sm:$0xff]
      %v1001 = vld [vmem:[%s990 + $0x50] sm:$0xff]
      %v1002 = vld [vmem:[%s990 + $0x58] sm:$0xff]
      %v1003 = vld [vmem:[%s990 + $0x60] sm:$0xff]
      %v1004 = vld [vmem:[%s990 + $0x68] sm:$0xff]
      %v1005 = vld [vmem:[%s990 + $0x70] sm:$0xff]
      %v1006 = vld [vmem:[%s990 + $0x78] sm:$0xff]
      %v1007 = vld [vmem:[%s990 + $0x80] sm:$0xff]
      %v1008 = vld [vmem:[%s990 + $0x88] sm:$0xff]
      %v1009 = vld [vmem:[%s990 + $0x90] sm:$0xff]
      %v1010 = vld [vmem:[%s990 + $0x98] sm:$0xff]
      %v1011 = vld [vmem:[%s990 + $0xa0] sm:$0xff]
      %v1012 = vld [vmem:[%s990 + $0xa8] sm:$0xff]
      %v1013 = vld [vmem:[%s990 + $0xb0] sm:$0xff]
      %v1014 = vld [vmem:[%s990 + $0xb8] sm:$0xff]
      %v1015 = vld [vmem:[%s990 + $0xc0] sm:$0xff]
      %v1016 = vld [vmem:[%s990 + $0xc8] sm:$0xff]
      %v1017 = vld [vmem:[%s990 + $0xd0] sm:$0xff]
      %v1018 = vld [vmem:[%s990 + $0xd8] sm:$0xff]
      %s1019 = scalar_lea.vmem %s223, 12
      %v1020 = vld [vmem:[%s1019] sm:$0xf]
      %v1022 = vsel %vm275, %v991, 0
      %v1025 = vsel %vm275, %v992, 0
      %v1028 = vsel %vm275, %v993, 0
      %v1031 = vsel %vm275, %v994, 0
      %v1034 = vsel %vm275, %v995, 0
      %v1037 = vsel %vm275, %v996, 0
      %v1040 = vsel %vm275, %v997, 0
      %v1043 = vsel %vm275, %v998, 0
      %v1046 = vsel %vm275, %v999, 0
      %v1049 = vsel %vm275, %v1000, 0
      %v1052 = vsel %vm275, %v1001, 0
      %v1055 = vsel %vm275, %v1002, 0
      %v1058 = vsel %vm275, %v1003, 0
      %v1061 = vsel %vm275, %v1004, 0
      %v1064 = vsel %vm275, %v1005, 0
      %v1067 = vsel %vm275, %v1006, 0
      %v1070 = vsel %vm275, %v1007, 0
      %v1073 = vsel %vm275, %v1008, 0
      %v1076 = vsel %vm275, %v1009, 0
      %v1079 = vsel %vm275, %v1010, 0
      %v1082 = vsel %vm275, %v1011, 0
      %v1085 = vsel %vm275, %v1012, 0
      %v1088 = vsel %vm275, %v1013, 0
      %v1091 = vsel %vm275, %v1014, 0
      %v1094 = vsel %vm275, %v1015, 0
      %v1097 = vsel %vm275, %v1016, 0
      %v1100 = vsel %vm275, %v1017, 0
      %v1103 = vsel %vm275, %v1018, 0
      %v1106 = vsel %vm360, %v1020, 0
      %1108 = vmatpush.msra.mxu0 0.0
      %1109 = vmatpush.msra.mxu0 0.0
      %1110 = vmatpush.msra.mxu0 0.0
      %1111 = vmatpush.msra.mxu0 0.0
      %1112 = vmatpush.msra.mxu0 0.0
      %1113 = vmatpush.msra.mxu0 0.0
      %1114 = vmatpush.msra.mxu0 0.0
      %1115 = vmatpush.msra.mxu0 0.0
      %1116 = vmatpush.msra.mxu0 0.0
      %1117 = vmatpush.msra.mxu0 0.0
      %1118 = vmatpush.msra.mxu0 0.0
      %1119 = vmatpush.msra.mxu0 0.0
      %1120 = vmatpush.msra.mxu0 0.0
      %1121 = vmatpush.msra.mxu0 0.0
      %1122 = vmatpush.msra.mxu0 0.0
      %1123 = vmatpush.msra.mxu0 %v1106
      %1124 = vmatmul.f32.gmra.mxu0 %v1022
      %v1125 = vpop.f32.mrf.mxu0
      %v1126 = vadd.f32 0.0, %v1125
      %1127 = vmatmul.f32.gmra.mxu0 %v1025
      %v1128 = vpop.f32.mrf.mxu0
      %v1129 = vadd.f32 0.0, %v1128
      %1130 = vmatmul.f32.gmra.mxu0 %v1028
      %v1131 = vpop.f32.mrf.mxu0
      %v1132 = vadd.f32 0.0, %v1131
      %1133 = vmatmul.f32.gmra.mxu0 %v1031
      %v1134 = vpop.f32.mrf.mxu0
      %v1135 = vadd.f32 0.0, %v1134
      %1136 = vmatmul.f32.gmra.mxu0 %v1034
      %v1137 = vpop.f32.mrf.mxu0
      %v1138 = vadd.f32 0.0, %v1137
      %1139 = vmatmul.f32.gmra.mxu0 %v1037
      %v1140 = vpop.f32.mrf.mxu0
      %v1141 = vadd.f32 0.0, %v1140
      %1142 = vmatmul.f32.gmra.mxu0 %v1040
      %v1143 = vpop.f32.mrf.mxu0
      %v1144 = vadd.f32 0.0, %v1143
      %1145 = vmatmul.f32.gmra.mxu0 %v1043
      %v1146 = vpop.f32.mrf.mxu0
      %v1147 = vadd.f32 0.0, %v1146
      %1148 = vmatmul.f32.gmra.mxu0 %v1046
      %v1149 = vpop.f32.mrf.mxu0
      %v1150 = vadd.f32 0.0, %v1149
      %1151 = vmatmul.f32.gmra.mxu0 %v1049
      %v1152 = vpop.f32.mrf.mxu0
      %v1153 = vadd.f32 0.0, %v1152
      %1154 = vmatmul.f32.gmra.mxu0 %v1052
      %v1155 = vpop.f32.mrf.mxu0
      %v1156 = vadd.f32 0.0, %v1155
      %1157 = vmatmul.f32.gmra.mxu0 %v1055
      %v1158 = vpop.f32.mrf.mxu0
      %v1159 = vadd.f32 0.0, %v1158
      %1160 = vmatmul.f32.gmra.mxu0 %v1058
      %v1161 = vpop.f32.mrf.mxu0
      %v1162 = vadd.f32 0.0, %v1161
      %1163 = vmatmul.f32.gmra.mxu0 %v1061
      %v1164 = vpop.f32.mrf.mxu0
      %v1165 = vadd.f32 0.0, %v1164
      %1166 = vmatmul.f32.gmra.mxu0 %v1064
      %v1167 = vpop.f32.mrf.mxu0
      %v1168 = vadd.f32 0.0, %v1167
      %1169 = vmatmul.f32.gmra.mxu0 %v1067
      %v1170 = vpop.f32.mrf.mxu0
      %v1171 = vadd.f32 0.0, %v1170
      %1172 = vmatmul.f32.gmra.mxu0 %v1070
      %v1173 = vpop.f32.mrf.mxu0
      %v1174 = vadd.f32 0.0, %v1173
      %1175 = vmatmul.f32.gmra.mxu0 %v1073
      %v1176 = vpop.f32.mrf.mxu0
      %v1177 = vadd.f32 0.0, %v1176
      %1178 = vmatmul.f32.gmra.mxu0 %v1076
      %v1179 = vpop.f32.mrf.mxu0
      %v1180 = vadd.f32 0.0, %v1179
      %1181 = vmatmul.f32.gmra.mxu0 %v1079
      %v1182 = vpop.f32.mrf.mxu0
      %v1183 = vadd.f32 0.0, %v1182
      %1184 = vmatmul.f32.gmra.mxu0 %v1082
      %v1185 = vpop.f32.mrf.mxu0
      %v1186 = vadd.f32 0.0, %v1185
      %1187 = vmatmul.f32.gmra.mxu0 %v1085
      %v1188 = vpop.f32.mrf.mxu0
      %v1189 = vadd.f32 0.0, %v1188
      %1190 = vmatmul.f32.gmra.mxu0 %v1088
      %v1191 = vpop.f32.mrf.mxu0
      %v1192 = vadd.f32 0.0, %v1191
      %1193 = vmatmul.f32.gmra.mxu0 %v1091
      %v1194 = vpop.f32.mrf.mxu0
      %v1195 = vadd.f32 0.0, %v1194
      %1196 = vmatmul.f32.gmra.mxu0 %v1094
      %v1197 = vpop.f32.mrf.mxu0
      %v1198 = vadd.f32 0.0, %v1197
      %1199 = vmatmul.f32.gmra.mxu0 %v1097
      %v1200 = vpop.f32.mrf.mxu0
      %v1201 = vadd.f32 0.0, %v1200
      %1202 = vmatmul.f32.gmra.mxu0 %v1100
      %v1203 = vpop.f32.mrf.mxu0
      %v1204 = vadd.f32 0.0, %v1203
      %1205 = vmatmul.f32.gmra.mxu0 %v1103
      %v1206 = vpop.f32.mrf.mxu0
      %v1207 = vadd.f32 0.0, %v1206
      %1208 = vdwg.mxu0
      %v1209 = vadd.f32 %v961, %v1126
      %v1210 = vadd.f32 %v962, %v1129
      %v1211 = vadd.f32 %v963, %v1132
      %v1212 = vadd.f32 %v964, %v1135
      %v1213 = vadd.f32 %v965, %v1138
      %v1214 = vadd.f32 %v966, %v1141
      %v1215 = vadd.f32 %v967, %v1144
      %v1216 = vadd.f32 %v968, %v1147
      %v1217 = vadd.f32 %v969, %v1150
      %v1218 = vadd.f32 %v970, %v1153
      %v1219 = vadd.f32 %v971, %v1156
      %v1220 = vadd.f32 %v972, %v1159
      %v1221 = vadd.f32 %v973, %v1162
      %v1222 = vadd.f32 %v974, %v1165
      %v1223 = vadd.f32 %v975, %v1168
      %v1224 = vadd.f32 %v976, %v1171
      %v1225 = vadd.f32 %v977, %v1174
      %v1226 = vadd.f32 %v978, %v1177
      %v1227 = vadd.f32 %v979, %v1180
      %v1228 = vadd.f32 %v980, %v1183
      %v1229 = vadd.f32 %v981, %v1186
      %v1230 = vadd.f32 %v982, %v1189
      %v1231 = vadd.f32 %v983, %v1192
      %v1232 = vadd.f32 %v984, %v1195
      %v1233 = vadd.f32 %v985, %v1198
      %v1234 = vadd.f32 %v986, %v1201
      %v1235 = vadd.f32 %v987, %v1204
      %v1236 = vadd.f32 %v988, %v1207
      %s1237 = sadd.s32 %s240, 17
      %s1238 = scalar_lea.vmem %s219, %s1237
      %v1239 = vld [vmem:[%s1238] sm:$0xff]
      %v1240 = vld [vmem:[%s1238 + $0x8] sm:$0xff]
      %v1241 = vld [vmem:[%s1238 + $0x10] sm:$0xff]
      %v1242 = vld [vmem:[%s1238 + $0x18] sm:$0xff]
      %v1243 = vld [vmem:[%s1238 + $0x20] sm:$0xff]
      %v1244 = vld [vmem:[%s1238 + $0x28] sm:$0xff]
      %v1245 = vld [vmem:[%s1238 + $0x30] sm:$0xff]
      %v1246 = vld [vmem:[%s1238 + $0x38] sm:$0xff]
      %v1247 = vld [vmem:[%s1238 + $0x40] sm:$0xff]
      %v1248 = vld [vmem:[%s1238 + $0x48] sm:$0xff]
      %v1249 = vld [vmem:[%s1238 + $0x50] sm:$0xff]
      %v1250 = vld [vmem:[%s1238 + $0x58] sm:$0xff]
      %v1251 = vld [vmem:[%s1238 + $0x60] sm:$0xff]
      %v1252 = vld [vmem:[%s1238 + $0x68] sm:$0xff]
      %v1253 = vld [vmem:[%s1238 + $0x70] sm:$0xff]
      %v1254 = vld [vmem:[%s1238 + $0x78] sm:$0xff]
      %v1255 = vld [vmem:[%s1238 + $0x80] sm:$0xff]
      %v1256 = vld [vmem:[%s1238 + $0x88] sm:$0xff]
      %v1257 = vld [vmem:[%s1238 + $0x90] sm:$0xff]
      %v1258 = vld [vmem:[%s1238 + $0x98] sm:$0xff]
      %v1259 = vld [vmem:[%s1238 + $0xa0] sm:$0xff]
      %v1260 = vld [vmem:[%s1238 + $0xa8] sm:$0xff]
      %v1261 = vld [vmem:[%s1238 + $0xb0] sm:$0xff]
      %v1262 = vld [vmem:[%s1238 + $0xb8] sm:$0xff]
      %v1263 = vld [vmem:[%s1238 + $0xc0] sm:$0xff]
      %v1264 = vld [vmem:[%s1238 + $0xc8] sm:$0xff]
      %v1265 = vld [vmem:[%s1238 + $0xd0] sm:$0xff]
      %v1266 = vld [vmem:[%s1238 + $0xd8] sm:$0xff]
      %s1267 = scalar_lea.vmem %s223, 16
      %v1268 = vld [vmem:[%s1267] sm:$0xf]
      %v1270 = vsel %vm275, %v1239, 0
      %v1273 = vsel %vm275, %v1240, 0
      %v1276 = vsel %vm275, %v1241, 0
      %v1279 = vsel %vm275, %v1242, 0
      %v1282 = vsel %vm275, %v1243, 0
      %v1285 = vsel %vm275, %v1244, 0
      %v1288 = vsel %vm275, %v1245, 0
      %v1291 = vsel %vm275, %v1246, 0
      %v1294 = vsel %vm275, %v1247, 0
      %v1297 = vsel %vm275, %v1248, 0
      %v1300 = vsel %vm275, %v1249, 0
      %v1303 = vsel %vm275, %v1250, 0
      %v1306 = vsel %vm275, %v1251, 0
      %v1309 = vsel %vm275, %v1252, 0
      %v1312 = vsel %vm275, %v1253, 0
      %v1315 = vsel %vm275, %v1254, 0
      %v1318 = vsel %vm275, %v1255, 0
      %v1321 = vsel %vm275, %v1256, 0
      %v1324 = vsel %vm275, %v1257, 0
      %v1327 = vsel %vm275, %v1258, 0
      %v1330 = vsel %vm275, %v1259, 0
      %v1333 = vsel %vm275, %v1260, 0
      %v1336 = vsel %vm275, %v1261, 0
      %v1339 = vsel %vm275, %v1262, 0
      %v1342 = vsel %vm275, %v1263, 0
      %v1345 = vsel %vm275, %v1264, 0
      %v1348 = vsel %vm275, %v1265, 0
      %v1351 = vsel %vm275, %v1266, 0
      %v1354 = vsel %vm360, %v1268, 0
      %1356 = vmatpush.msra.mxu0 0.0
      %1357 = vmatpush.msra.mxu0 0.0
      %1358 = vmatpush.msra.mxu0 0.0
      %1359 = vmatpush.msra.mxu0 0.0
      %1360 = vmatpush.msra.mxu0 0.0
      %1361 = vmatpush.msra.mxu0 0.0
      %1362 = vmatpush.msra.mxu0 0.0
      %1363 = vmatpush.msra.mxu0 0.0
      %1364 = vmatpush.msra.mxu0 0.0
      %1365 = vmatpush.msra.mxu0 0.0
      %1366 = vmatpush.msra.mxu0 0.0
      %1367 = vmatpush.msra.mxu0 0.0
      %1368 = vmatpush.msra.mxu0 0.0
      %1369 = vmatpush.msra.mxu0 0.0
      %1370 = vmatpush.msra.mxu0 0.0
      %1371 = vmatpush.msra.mxu0 %v1354
      %1372 = vmatmul.f32.gmra.mxu0 %v1270
      %v1373 = vpop.f32.mrf.mxu0
      %v1374 = vadd.f32 0.0, %v1373
      %1375 = vmatmul.f32.gmra.mxu0 %v1273
      %v1376 = vpop.f32.mrf.mxu0
      %v1377 = vadd.f32 0.0, %v1376
      %1378 = vmatmul.f32.gmra.mxu0 %v1276
      %v1379 = vpop.f32.mrf.mxu0
      %v1380 = vadd.f32 0.0, %v1379
      %1381 = vmatmul.f32.gmra.mxu0 %v1279
      %v1382 = vpop.f32.mrf.mxu0
      %v1383 = vadd.f32 0.0, %v1382
      %1384 = vmatmul.f32.gmra.mxu0 %v1282
      %v1385 = vpop.f32.mrf.mxu0
      %v1386 = vadd.f32 0.0, %v1385
      %1387 = vmatmul.f32.gmra.mxu0 %v1285
      %v1388 = vpop.f32.mrf.mxu0
      %v1389 = vadd.f32 0.0, %v1388
      %1390 = vmatmul.f32.gmra.mxu0 %v1288
      %v1391 = vpop.f32.mrf.mxu0
      %v1392 = vadd.f32 0.0, %v1391
      %1393 = vmatmul.f32.gmra.mxu0 %v1291
      %v1394 = vpop.f32.mrf.mxu0
      %v1395 = vadd.f32 0.0, %v1394
      %1396 = vmatmul.f32.gmra.mxu0 %v1294
      %v1397 = vpop.f32.mrf.mxu0
      %v1398 = vadd.f32 0.0, %v1397
      %1399 = vmatmul.f32.gmra.mxu0 %v1297
      %v1400 = vpop.f32.mrf.mxu0
      %v1401 = vadd.f32 0.0, %v1400
      %1402 = vmatmul.f32.gmra.mxu0 %v1300
      %v1403 = vpop.f32.mrf.mxu0
      %v1404 = vadd.f32 0.0, %v1403
      %1405 = vmatmul.f32.gmra.mxu0 %v1303
      %v1406 = vpop.f32.mrf.mxu0
      %v1407 = vadd.f32 0.0, %v1406
      %1408 = vmatmul.f32.gmra.mxu0 %v1306
      %v1409 = vpop.f32.mrf.mxu0
      %v1410 = vadd.f32 0.0, %v1409
      %1411 = vmatmul.f32.gmra.mxu0 %v1309
      %v1412 = vpop.f32.mrf.mxu0
      %v1413 = vadd.f32 0.0, %v1412
      %1414 = vmatmul.f32.gmra.mxu0 %v1312
      %v1415 = vpop.f32.mrf.mxu0
      %v1416 = vadd.f32 0.0, %v1415
      %1417 = vmatmul.f32.gmra.mxu0 %v1315
      %v1418 = vpop.f32.mrf.mxu0
      %v1419 = vadd.f32 0.0, %v1418
      %1420 = vmatmul.f32.gmra.mxu0 %v1318
      %v1421 = vpop.f32.mrf.mxu0
      %v1422 = vadd.f32 0.0, %v1421
      %1423 = vmatmul.f32.gmra.mxu0 %v1321
      %v1424 = vpop.f32.mrf.mxu0
      %v1425 = vadd.f32 0.0, %v1424
      %1426 = vmatmul.f32.gmra.mxu0 %v1324
      %v1427 = vpop.f32.mrf.mxu0
      %v1428 = vadd.f32 0.0, %v1427
      %1429 = vmatmul.f32.gmra.mxu0 %v1327
      %v1430 = vpop.f32.mrf.mxu0
      %v1431 = vadd.f32 0.0, %v1430
      %1432 = vmatmul.f32.gmra.mxu0 %v1330
      %v1433 = vpop.f32.mrf.mxu0
      %v1434 = vadd.f32 0.0, %v1433
      %1435 = vmatmul.f32.gmra.mxu0 %v1333
      %v1436 = vpop.f32.mrf.mxu0
      %v1437 = vadd.f32 0.0, %v1436
      %1438 = vmatmul.f32.gmra.mxu0 %v1336
      %v1439 = vpop.f32.mrf.mxu0
      %v1440 = vadd.f32 0.0, %v1439
      %1441 = vmatmul.f32.gmra.mxu0 %v1339
      %v1442 = vpop.f32.mrf.mxu0
      %v1443 = vadd.f32 0.0, %v1442
      %1444 = vmatmul.f32.gmra.mxu0 %v1342
      %v1445 = vpop.f32.mrf.mxu0
      %v1446 = vadd.f32 0.0, %v1445
      %1447 = vmatmul.f32.gmra.mxu0 %v1345
      %v1448 = vpop.f32.mrf.mxu0
      %v1449 = vadd.f32 0.0, %v1448
      %1450 = vmatmul.f32.gmra.mxu0 %v1348
      %v1451 = vpop.f32.mrf.mxu0
      %v1452 = vadd.f32 0.0, %v1451
      %1453 = vmatmul.f32.gmra.mxu0 %v1351
      %v1454 = vpop.f32.mrf.mxu0
      %v1455 = vadd.f32 0.0, %v1454
      %1456 = vdwg.mxu0
      %v1457 = vadd.f32 %v1209, %v1374
      %v1458 = vadd.f32 %v1210, %v1377
      %v1459 = vadd.f32 %v1211, %v1380
      %v1460 = vadd.f32 %v1212, %v1383
      %v1461 = vadd.f32 %v1213, %v1386
      %v1462 = vadd.f32 %v1214, %v1389
      %v1463 = vadd.f32 %v1215, %v1392
      %v1464 = vadd.f32 %v1216, %v1395
      %v1465 = vadd.f32 %v1217, %v1398
      %v1466 = vadd.f32 %v1218, %v1401
      %v1467 = vadd.f32 %v1219, %v1404
      %v1468 = vadd.f32 %v1220, %v1407
      %v1469 = vadd.f32 %v1221, %v1410
      %v1470 = vadd.f32 %v1222, %v1413
      %v1471 = vadd.f32 %v1223, %v1416
      %v1472 = vadd.f32 %v1224, %v1419
      %v1473 = vadd.f32 %v1225, %v1422
      %v1474 = vadd.f32 %v1226, %v1425
      %v1475 = vadd.f32 %v1227, %v1428
      %v1476 = vadd.f32 %v1228, %v1431
      %v1477 = vadd.f32 %v1229, %v1434
      %v1478 = vadd.f32 %v1230, %v1437
      %v1479 = vadd.f32 %v1231, %v1440
      %v1480 = vadd.f32 %v1232, %v1443
      %v1481 = vadd.f32 %v1233, %v1446
      %v1482 = vadd.f32 %v1234, %v1449
      %v1483 = vadd.f32 %v1235, %v1452
      %v1484 = vadd.f32 %v1236, %v1455
      %s1485 = sadd.s32 %s240, 18
      %s1486 = scalar_lea.vmem %s219, %s1485
      %v1487 = vld [vmem:[%s1486] sm:$0xff]
      %v1488 = vld [vmem:[%s1486 + $0x8] sm:$0xff]
      %v1489 = vld [vmem:[%s1486 + $0x10] sm:$0xff]
      %v1490 = vld [vmem:[%s1486 + $0x18] sm:$0xff]
      %v1491 = vld [vmem:[%s1486 + $0x20] sm:$0xff]
      %v1492 = vld [vmem:[%s1486 + $0x28] sm:$0xff]
      %v1493 = vld [vmem:[%s1486 + $0x30] sm:$0xff]
      %v1494 = vld [vmem:[%s1486 + $0x38] sm:$0xff]
      %v1495 = vld [vmem:[%s1486 + $0x40] sm:$0xff]
      %v1496 = vld [vmem:[%s1486 + $0x48] sm:$0xff]
      %v1497 = vld [vmem:[%s1486 + $0x50] sm:$0xff]
      %v1498 = vld [vmem:[%s1486 + $0x58] sm:$0xff]
      %v1499 = vld [vmem:[%s1486 + $0x60] sm:$0xff]
      %v1500 = vld [vmem:[%s1486 + $0x68] sm:$0xff]
      %v1501 = vld [vmem:[%s1486 + $0x70] sm:$0xff]
      %v1502 = vld [vmem:[%s1486 + $0x78] sm:$0xff]
      %v1503 = vld [vmem:[%s1486 + $0x80] sm:$0xff]
      %v1504 = vld [vmem:[%s1486 + $0x88] sm:$0xff]
      %v1505 = vld [vmem:[%s1486 + $0x90] sm:$0xff]
      %v1506 = vld [vmem:[%s1486 + $0x98] sm:$0xff]
      %v1507 = vld [vmem:[%s1486 + $0xa0] sm:$0xff]
      %v1508 = vld [vmem:[%s1486 + $0xa8] sm:$0xff]
      %v1509 = vld [vmem:[%s1486 + $0xb0] sm:$0xff]
      %v1510 = vld [vmem:[%s1486 + $0xb8] sm:$0xff]
      %v1511 = vld [vmem:[%s1486 + $0xc0] sm:$0xff]
      %v1512 = vld [vmem:[%s1486 + $0xc8] sm:$0xff]
      %v1513 = vld [vmem:[%s1486 + $0xd0] sm:$0xff]
      %v1514 = vld [vmem:[%s1486 + $0xd8] sm:$0xff]
      %s1515 = scalar_lea.vmem %s223, 20
      %v1516 = vld [vmem:[%s1515] sm:$0xf]
      %v1518 = vsel %vm275, %v1487, 0
      %v1521 = vsel %vm275, %v1488, 0
      %v1524 = vsel %vm275, %v1489, 0
      %v1527 = vsel %vm275, %v1490, 0
      %v1530 = vsel %vm275, %v1491, 0
      %v1533 = vsel %vm275, %v1492, 0
      %v1536 = vsel %vm275, %v1493, 0
      %v1539 = vsel %vm275, %v1494, 0
      %v1542 = vsel %vm275, %v1495, 0
      %v1545 = vsel %vm275, %v1496, 0
      %v1548 = vsel %vm275, %v1497, 0
      %v1551 = vsel %vm275, %v1498, 0
      %v1554 = vsel %vm275, %v1499, 0
      %v1557 = vsel %vm275, %v1500, 0
      %v1560 = vsel %vm275, %v1501, 0
      %v1563 = vsel %vm275, %v1502, 0
      %v1566 = vsel %vm275, %v1503, 0
      %v1569 = vsel %vm275, %v1504, 0
      %v1572 = vsel %vm275, %v1505, 0
      %v1575 = vsel %vm275, %v1506, 0
      %v1578 = vsel %vm275, %v1507, 0
      %v1581 = vsel %vm275, %v1508, 0
      %v1584 = vsel %vm275, %v1509, 0
      %v1587 = vsel %vm275, %v1510, 0
      %v1590 = vsel %vm275, %v1511, 0
      %v1593 = vsel %vm275, %v1512, 0
      %v1596 = vsel %vm275, %v1513, 0
      %v1599 = vsel %vm275, %v1514, 0
      %v1602 = vsel %vm360, %v1516, 0
      %1604 = vmatpush.msra.mxu0 0.0
      %1605 = vmatpush.msra.mxu0 0.0
      %1606 = vmatpush.msra.mxu0 0.0
      %1607 = vmatpush.msra.mxu0 0.0
      %1608 = vmatpush.msra.mxu0 0.0
      %1609 = vmatpush.msra.mxu0 0.0
      %1610 = vmatpush.msra.mxu0 0.0
      %1611 = vmatpush.msra.mxu0 0.0
      %1612 = vmatpush.msra.mxu0 0.0
      %1613 = vmatpush.msra.mxu0 0.0
      %1614 = vmatpush.msra.mxu0 0.0
      %1615 = vmatpush.msra.mxu0 0.0
      %1616 = vmatpush.msra.mxu0 0.0
      %1617 = vmatpush.msra.mxu0 0.0
      %1618 = vmatpush.msra.mxu0 0.0
      %1619 = vmatpush.msra.mxu0 %v1602
      %1620 = vmatmul.f32.gmra.mxu0 %v1518
      %v1621 = vpop.f32.mrf.mxu0
      %v1622 = vadd.f32 0.0, %v1621
      %1623 = vmatmul.f32.gmra.mxu0 %v1521
      %v1624 = vpop.f32.mrf.mxu0
      %v1625 = vadd.f32 0.0, %v1624
      %1626 = vmatmul.f32.gmra.mxu0 %v1524
      %v1627 = vpop.f32.mrf.mxu0
      %v1628 = vadd.f32 0.0, %v1627
      %1629 = vmatmul.f32.gmra.mxu0 %v1527
      %v1630 = vpop.f32.mrf.mxu0
      %v1631 = vadd.f32 0.0, %v1630
      %1632 = vmatmul.f32.gmra.mxu0 %v1530
      %v1633 = vpop.f32.mrf.mxu0
      %v1634 = vadd.f32 0.0, %v1633
      %1635 = vmatmul.f32.gmra.mxu0 %v1533
      %v1636 = vpop.f32.mrf.mxu0
      %v1637 = vadd.f32 0.0, %v1636
      %1638 = vmatmul.f32.gmra.mxu0 %v1536
      %v1639 = vpop.f32.mrf.mxu0
      %v1640 = vadd.f32 0.0, %v1639
      %1641 = vmatmul.f32.gmra.mxu0 %v1539
      %v1642 = vpop.f32.mrf.mxu0
      %v1643 = vadd.f32 0.0, %v1642
      %1644 = vmatmul.f32.gmra.mxu0 %v1542
      %v1645 = vpop.f32.mrf.mxu0
      %v1646 = vadd.f32 0.0, %v1645
      %1647 = vmatmul.f32.gmra.mxu0 %v1545
      %v1648 = vpop.f32.mrf.mxu0
      %v1649 = vadd.f32 0.0, %v1648
      %1650 = vmatmul.f32.gmra.mxu0 %v1548
      %v1651 = vpop.f32.mrf.mxu0
      %v1652 = vadd.f32 0.0, %v1651
      %1653 = vmatmul.f32.gmra.mxu0 %v1551
      %v1654 = vpop.f32.mrf.mxu0
      %v1655 = vadd.f32 0.0, %v1654
      %1656 = vmatmul.f32.gmra.mxu0 %v1554
      %v1657 = vpop.f32.mrf.mxu0
      %v1658 = vadd.f32 0.0, %v1657
      %1659 = vmatmul.f32.gmra.mxu0 %v1557
      %v1660 = vpop.f32.mrf.mxu0
      %v1661 = vadd.f32 0.0, %v1660
      %1662 = vmatmul.f32.gmra.mxu0 %v1560
      %v1663 = vpop.f32.mrf.mxu0
      %v1664 = vadd.f32 0.0, %v1663
      %1665 = vmatmul.f32.gmra.mxu0 %v1563
      %v1666 = vpop.f32.mrf.mxu0
      %v1667 = vadd.f32 0.0, %v1666
      %1668 = vmatmul.f32.gmra.mxu0 %v1566
      %v1669 = vpop.f32.mrf.mxu0
      %v1670 = vadd.f32 0.0, %v1669
      %1671 = vmatmul.f32.gmra.mxu0 %v1569
      %v1672 = vpop.f32.mrf.mxu0
      %v1673 = vadd.f32 0.0, %v1672
      %1674 = vmatmul.f32.gmra.mxu0 %v1572
      %v1675 = vpop.f32.mrf.mxu0
      %v1676 = vadd.f32 0.0, %v1675
      %1677 = vmatmul.f32.gmra.mxu0 %v1575
      %v1678 = vpop.f32.mrf.mxu0
      %v1679 = vadd.f32 0.0, %v1678
      %1680 = vmatmul.f32.gmra.mxu0 %v1578
      %v1681 = vpop.f32.mrf.mxu0
      %v1682 = vadd.f32 0.0, %v1681
      %1683 = vmatmul.f32.gmra.mxu0 %v1581
      %v1684 = vpop.f32.mrf.mxu0
      %v1685 = vadd.f32 0.0, %v1684
      %1686 = vmatmul.f32.gmra.mxu0 %v1584
      %v1687 = vpop.f32.mrf.mxu0
      %v1688 = vadd.f32 0.0, %v1687
      %1689 = vmatmul.f32.gmra.mxu0 %v1587
      %v1690 = vpop.f32.mrf.mxu0
      %v1691 = vadd.f32 0.0, %v1690
      %1692 = vmatmul.f32.gmra.mxu0 %v1590
      %v1693 = vpop.f32.mrf.mxu0
      %v1694 = vadd.f32 0.0, %v1693
      %1695 = vmatmul.f32.gmra.mxu0 %v1593
      %v1696 = vpop.f32.mrf.mxu0
      %v1697 = vadd.f32 0.0, %v1696
      %1698 = vmatmul.f32.gmra.mxu0 %v1596
      %v1699 = vpop.f32.mrf.mxu0
      %v1700 = vadd.f32 0.0, %v1699
      %1701 = vmatmul.f32.gmra.mxu0 %v1599
      %v1702 = vpop.f32.mrf.mxu0
      %v1703 = vadd.f32 0.0, %v1702
      %1704 = vdwg.mxu0
      %v1705 = vadd.f32 %v1457, %v1622
      %v1706 = vadd.f32 %v1458, %v1625
      %v1707 = vadd.f32 %v1459, %v1628
      %v1708 = vadd.f32 %v1460, %v1631
      %v1709 = vadd.f32 %v1461, %v1634
      %v1710 = vadd.f32 %v1462, %v1637
      %v1711 = vadd.f32 %v1463, %v1640
      %v1712 = vadd.f32 %v1464, %v1643
      %v1713 = vadd.f32 %v1465, %v1646
      %v1714 = vadd.f32 %v1466, %v1649
      %v1715 = vadd.f32 %v1467, %v1652
      %v1716 = vadd.f32 %v1468, %v1655
      %v1717 = vadd.f32 %v1469, %v1658
      %v1718 = vadd.f32 %v1470, %v1661
      %v1719 = vadd.f32 %v1471, %v1664
      %v1720 = vadd.f32 %v1472, %v1667
      %v1721 = vadd.f32 %v1473, %v1670
      %v1722 = vadd.f32 %v1474, %v1673
      %v1723 = vadd.f32 %v1475, %v1676
      %v1724 = vadd.f32 %v1476, %v1679
      %v1725 = vadd.f32 %v1477, %v1682
      %v1726 = vadd.f32 %v1478, %v1685
      %v1727 = vadd.f32 %v1479, %v1688
      %v1728 = vadd.f32 %v1480, %v1691
      %v1729 = vadd.f32 %v1481, %v1694
      %v1730 = vadd.f32 %v1482, %v1697
      %v1731 = vadd.f32 %v1483, %v1700
      %v1732 = vadd.f32 %v1484, %v1703
      %s1733 = sadd.s32 %s240, 32
      %s1734 = scalar_lea.vmem %s219, %s1733
      %v1735 = vld [vmem:[%s1734] sm:$0xff]
      %v1736 = vld [vmem:[%s1734 + $0x8] sm:$0xff]
      %v1737 = vld [vmem:[%s1734 + $0x10] sm:$0xff]
      %v1738 = vld [vmem:[%s1734 + $0x18] sm:$0xff]
      %v1739 = vld [vmem:[%s1734 + $0x20] sm:$0xff]
      %v1740 = vld [vmem:[%s1734 + $0x28] sm:$0xff]
      %v1741 = vld [vmem:[%s1734 + $0x30] sm:$0xff]
      %v1742 = vld [vmem:[%s1734 + $0x38] sm:$0xff]
      %v1743 = vld [vmem:[%s1734 + $0x40] sm:$0xff]
      %v1744 = vld [vmem:[%s1734 + $0x48] sm:$0xff]
      %v1745 = vld [vmem:[%s1734 + $0x50] sm:$0xff]
      %v1746 = vld [vmem:[%s1734 + $0x58] sm:$0xff]
      %v1747 = vld [vmem:[%s1734 + $0x60] sm:$0xff]
      %v1748 = vld [vmem:[%s1734 + $0x68] sm:$0xff]
      %v1749 = vld [vmem:[%s1734 + $0x70] sm:$0xff]
      %v1750 = vld [vmem:[%s1734 + $0x78] sm:$0xff]
      %v1751 = vld [vmem:[%s1734 + $0x80] sm:$0xff]
      %v1752 = vld [vmem:[%s1734 + $0x88] sm:$0xff]
      %v1753 = vld [vmem:[%s1734 + $0x90] sm:$0xff]
      %v1754 = vld [vmem:[%s1734 + $0x98] sm:$0xff]
      %v1755 = vld [vmem:[%s1734 + $0xa0] sm:$0xff]
      %v1756 = vld [vmem:[%s1734 + $0xa8] sm:$0xff]
      %v1757 = vld [vmem:[%s1734 + $0xb0] sm:$0xff]
      %v1758 = vld [vmem:[%s1734 + $0xb8] sm:$0xff]
      %v1759 = vld [vmem:[%s1734 + $0xc0] sm:$0xff]
      %v1760 = vld [vmem:[%s1734 + $0xc8] sm:$0xff]
      %v1761 = vld [vmem:[%s1734 + $0xd0] sm:$0xff]
      %v1762 = vld [vmem:[%s1734 + $0xd8] sm:$0xff]
      %s1763 = scalar_lea.vmem %s223, 24
      %v1764 = vld [vmem:[%s1763] sm:$0xf]
      %v1766 = vsel %vm275, %v1735, 0
      %v1769 = vsel %vm275, %v1736, 0
      %v1772 = vsel %vm275, %v1737, 0
      %v1775 = vsel %vm275, %v1738, 0
      %v1778 = vsel %vm275, %v1739, 0
      %v1781 = vsel %vm275, %v1740, 0
      %v1784 = vsel %vm275, %v1741, 0
      %v1787 = vsel %vm275, %v1742, 0
      %v1790 = vsel %vm275, %v1743, 0
      %v1793 = vsel %vm275, %v1744, 0
      %v1796 = vsel %vm275, %v1745, 0
      %v1799 = vsel %vm275, %v1746, 0
      %v1802 = vsel %vm275, %v1747, 0
      %v1805 = vsel %vm275, %v1748, 0
      %v1808 = vsel %vm275, %v1749, 0
      %v1811 = vsel %vm275, %v1750, 0
      %v1814 = vsel %vm275, %v1751, 0
      %v1817 = vsel %vm275, %v1752, 0
      %v1820 = vsel %vm275, %v1753, 0
      %v1823 = vsel %vm275, %v1754, 0
      %v1826 = vsel %vm275, %v1755, 0
      %v1829 = vsel %vm275, %v1756, 0
      %v1832 = vsel %vm275, %v1757, 0
      %v1835 = vsel %vm275, %v1758, 0
      %v1838 = vsel %vm275, %v1759, 0
      %v1841 = vsel %vm275, %v1760, 0
      %v1844 = vsel %vm275, %v1761, 0
      %v1847 = vsel %vm275, %v1762, 0
      %v1850 = vsel %vm360, %v1764, 0
      %1852 = vmatpush.msra.mxu0 0.0
      %1853 = vmatpush.msra.mxu0 0.0
      %1854 = vmatpush.msra.mxu0 0.0
      %1855 = vmatpush.msra.mxu0 0.0
      %1856 = vmatpush.msra.mxu0 0.0
      %1857 = vmatpush.msra.mxu0 0.0
      %1858 = vmatpush.msra.mxu0 0.0
      %1859 = vmatpush.msra.mxu0 0.0
      %1860 = vmatpush.msra.mxu0 0.0
      %1861 = vmatpush.msra.mxu0 0.0
      %1862 = vmatpush.msra.mxu0 0.0
      %1863 = vmatpush.msra.mxu0 0.0
      %1864 = vmatpush.msra.mxu0 0.0
      %1865 = vmatpush.msra.mxu0 0.0
      %1866 = vmatpush.msra.mxu0 0.0
      %1867 = vmatpush.msra.mxu0 %v1850
      %1868 = vmatmul.f32.gmra.mxu0 %v1766
      %v1869 = vpop.f32.mrf.mxu0
      %v1870 = vadd.f32 0.0, %v1869
      %1871 = vmatmul.f32.gmra.mxu0 %v1769
      %v1872 = vpop.f32.mrf.mxu0
      %v1873 = vadd.f32 0.0, %v1872
      %1874 = vmatmul.f32.gmra.mxu0 %v1772
      %v1875 = vpop.f32.mrf.mxu0
      %v1876 = vadd.f32 0.0, %v1875
      %1877 = vmatmul.f32.gmra.mxu0 %v1775
      %v1878 = vpop.f32.mrf.mxu0
      %v1879 = vadd.f32 0.0, %v1878
      %1880 = vmatmul.f32.gmra.mxu0 %v1778
      %v1881 = vpop.f32.mrf.mxu0
      %v1882 = vadd.f32 0.0, %v1881
      %1883 = vmatmul.f32.gmra.mxu0 %v1781
      %v1884 = vpop.f32.mrf.mxu0
      %v1885 = vadd.f32 0.0, %v1884
      %1886 = vmatmul.f32.gmra.mxu0 %v1784
      %v1887 = vpop.f32.mrf.mxu0
      %v1888 = vadd.f32 0.0, %v1887
      %1889 = vmatmul.f32.gmra.mxu0 %v1787
      %v1890 = vpop.f32.mrf.mxu0
      %v1891 = vadd.f32 0.0, %v1890
      %1892 = vmatmul.f32.gmra.mxu0 %v1790
      %v1893 = vpop.f32.mrf.mxu0
      %v1894 = vadd.f32 0.0, %v1893
      %1895 = vmatmul.f32.gmra.mxu0 %v1793
      %v1896 = vpop.f32.mrf.mxu0
      %v1897 = vadd.f32 0.0, %v1896
      %1898 = vmatmul.f32.gmra.mxu0 %v1796
      %v1899 = vpop.f32.mrf.mxu0
      %v1900 = vadd.f32 0.0, %v1899
      %1901 = vmatmul.f32.gmra.mxu0 %v1799
      %v1902 = vpop.f32.mrf.mxu0
      %v1903 = vadd.f32 0.0, %v1902
      %1904 = vmatmul.f32.gmra.mxu0 %v1802
      %v1905 = vpop.f32.mrf.mxu0
      %v1906 = vadd.f32 0.0, %v1905
      %1907 = vmatmul.f32.gmra.mxu0 %v1805
      %v1908 = vpop.f32.mrf.mxu0
      %v1909 = vadd.f32 0.0, %v1908
      %1910 = vmatmul.f32.gmra.mxu0 %v1808
      %v1911 = vpop.f32.mrf.mxu0
      %v1912 = vadd.f32 0.0, %v1911
      %1913 = vmatmul.f32.gmra.mxu0 %v1811
      %v1914 = vpop.f32.mrf.mxu0
      %v1915 = vadd.f32 0.0, %v1914
      %1916 = vmatmul.f32.gmra.mxu0 %v1814
      %v1917 = vpop.f32.mrf.mxu0
      %v1918 = vadd.f32 0.0, %v1917
      %1919 = vmatmul.f32.gmra.mxu0 %v1817
      %v1920 = vpop.f32.mrf.mxu0
      %v1921 = vadd.f32 0.0, %v1920
      %1922 = vmatmul.f32.gmra.mxu0 %v1820
      %v1923 = vpop.f32.mrf.mxu0
      %v1924 = vadd.f32 0.0, %v1923
      %1925 = vmatmul.f32.gmra.mxu0 %v1823
      %v1926 = vpop.f32.mrf.mxu0
      %v1927 = vadd.f32 0.0, %v1926
      %1928 = vmatmul.f32.gmra.mxu0 %v1826
      %v1929 = vpop.f32.mrf.mxu0
      %v1930 = vadd.f32 0.0, %v1929
      %1931 = vmatmul.f32.gmra.mxu0 %v1829
      %v1932 = vpop.f32.mrf.mxu0
      %v1933 = vadd.f32 0.0, %v1932
      %1934 = vmatmul.f32.gmra.mxu0 %v1832
      %v1935 = vpop.f32.mrf.mxu0
      %v1936 = vadd.f32 0.0, %v1935
      %1937 = vmatmul.f32.gmra.mxu0 %v1835
      %v1938 = vpop.f32.mrf.mxu0
      %v1939 = vadd.f32 0.0, %v1938
      %1940 = vmatmul.f32.gmra.mxu0 %v1838
      %v1941 = vpop.f32.mrf.mxu0
      %v1942 = vadd.f32 0.0, %v1941
      %1943 = vmatmul.f32.gmra.mxu0 %v1841
      %v1944 = vpop.f32.mrf.mxu0
      %v1945 = vadd.f32 0.0, %v1944
      %1946 = vmatmul.f32.gmra.mxu0 %v1844
      %v1947 = vpop.f32.mrf.mxu0
      %v1948 = vadd.f32 0.0, %v1947
      %1949 = vmatmul.f32.gmra.mxu0 %v1847
      %v1950 = vpop.f32.mrf.mxu0
      %v1951 = vadd.f32 0.0, %v1950
      %1952 = vdwg.mxu0
      %v1953 = vadd.f32 %v1705, %v1870
      %v1954 = vadd.f32 %v1706, %v1873
      %v1955 = vadd.f32 %v1707, %v1876
      %v1956 = vadd.f32 %v1708, %v1879
      %v1957 = vadd.f32 %v1709, %v1882
      %v1958 = vadd.f32 %v1710, %v1885
      %v1959 = vadd.f32 %v1711, %v1888
      %v1960 = vadd.f32 %v1712, %v1891
      %v1961 = vadd.f32 %v1713, %v1894
      %v1962 = vadd.f32 %v1714, %v1897
      %v1963 = vadd.f32 %v1715, %v1900
      %v1964 = vadd.f32 %v1716, %v1903
      %v1965 = vadd.f32 %v1717, %v1906
      %v1966 = vadd.f32 %v1718, %v1909
      %v1967 = vadd.f32 %v1719, %v1912
      %v1968 = vadd.f32 %v1720, %v1915
      %v1969 = vadd.f32 %v1721, %v1918
      %v1970 = vadd.f32 %v1722, %v1921
      %v1971 = vadd.f32 %v1723, %v1924
      %v1972 = vadd.f32 %v1724, %v1927
      %v1973 = vadd.f32 %v1725, %v1930
      %v1974 = vadd.f32 %v1726, %v1933
      %v1975 = vadd.f32 %v1727, %v1936
      %v1976 = vadd.f32 %v1728, %v1939
      %v1977 = vadd.f32 %v1729, %v1942
      %v1978 = vadd.f32 %v1730, %v1945
      %v1979 = vadd.f32 %v1731, %v1948
      %v1980 = vadd.f32 %v1732, %v1951
      %s1981 = sadd.s32 %s240, 33
      %s1982 = scalar_lea.vmem %s219, %s1981
      %v1983 = vld [vmem:[%s1982] sm:$0xff]
      %v1984 = vld [vmem:[%s1982 + $0x8] sm:$0xff]
      %v1985 = vld [vmem:[%s1982 + $0x10] sm:$0xff]
      %v1986 = vld [vmem:[%s1982 + $0x18] sm:$0xff]
      %v1987 = vld [vmem:[%s1982 + $0x20] sm:$0xff]
      %v1988 = vld [vmem:[%s1982 + $0x28] sm:$0xff]
      %v1989 = vld [vmem:[%s1982 + $0x30] sm:$0xff]
      %v1990 = vld [vmem:[%s1982 + $0x38] sm:$0xff]
      %v1991 = vld [vmem:[%s1982 + $0x40] sm:$0xff]
      %v1992 = vld [vmem:[%s1982 + $0x48] sm:$0xff]
      %v1993 = vld [vmem:[%s1982 + $0x50] sm:$0xff]
      %v1994 = vld [vmem:[%s1982 + $0x58] sm:$0xff]
      %v1995 = vld [vmem:[%s1982 + $0x60] sm:$0xff]
      %v1996 = vld [vmem:[%s1982 + $0x68] sm:$0xff]
      %v1997 = vld [vmem:[%s1982 + $0x70] sm:$0xff]
      %v1998 = vld [vmem:[%s1982 + $0x78] sm:$0xff]
      %v1999 = vld [vmem:[%s1982 + $0x80] sm:$0xff]
      %v2000 = vld [vmem:[%s1982 + $0x88] sm:$0xff]
      %v2001 = vld [vmem:[%s1982 + $0x90] sm:$0xff]
      %v2002 = vld [vmem:[%s1982 + $0x98] sm:$0xff]
      %v2003 = vld [vmem:[%s1982 + $0xa0] sm:$0xff]
      %v2004 = vld [vmem:[%s1982 + $0xa8] sm:$0xff]
      %v2005 = vld [vmem:[%s1982 + $0xb0] sm:$0xff]
      %v2006 = vld [vmem:[%s1982 + $0xb8] sm:$0xff]
      %v2007 = vld [vmem:[%s1982 + $0xc0] sm:$0xff]
      %v2008 = vld [vmem:[%s1982 + $0xc8] sm:$0xff]
      %v2009 = vld [vmem:[%s1982 + $0xd0] sm:$0xff]
      %v2010 = vld [vmem:[%s1982 + $0xd8] sm:$0xff]
      %s2011 = scalar_lea.vmem %s223, 28
      %v2012 = vld [vmem:[%s2011] sm:$0xf]
      %v2014 = vsel %vm275, %v1983, 0
      %v2017 = vsel %vm275, %v1984, 0
      %v2020 = vsel %vm275, %v1985, 0
      %v2023 = vsel %vm275, %v1986, 0
      %v2026 = vsel %vm275, %v1987, 0
      %v2029 = vsel %vm275, %v1988, 0
      %v2032 = vsel %vm275, %v1989, 0
      %v2035 = vsel %vm275, %v1990, 0
      %v2038 = vsel %vm275, %v1991, 0
      %v2041 = vsel %vm275, %v1992, 0
      %v2044 = vsel %vm275, %v1993, 0
      %v2047 = vsel %vm275, %v1994, 0
      %v2050 = vsel %vm275, %v1995, 0
      %v2053 = vsel %vm275, %v1996, 0
      %v2056 = vsel %vm275, %v1997, 0
      %v2059 = vsel %vm275, %v1998, 0
      %v2062 = vsel %vm275, %v1999, 0
      %v2065 = vsel %vm275, %v2000, 0
      %v2068 = vsel %vm275, %v2001, 0
      %v2071 = vsel %vm275, %v2002, 0
      %v2074 = vsel %vm275, %v2003, 0
      %v2077 = vsel %vm275, %v2004, 0
      %v2080 = vsel %vm275, %v2005, 0
      %v2083 = vsel %vm275, %v2006, 0
      %v2086 = vsel %vm275, %v2007, 0
      %v2089 = vsel %vm275, %v2008, 0
      %v2092 = vsel %vm275, %v2009, 0
      %v2095 = vsel %vm275, %v2010, 0
      %v2098 = vsel %vm360, %v2012, 0
      %2100 = vmatpush.msra.mxu0 0.0
      %2101 = vmatpush.msra.mxu0 0.0
      %2102 = vmatpush.msra.mxu0 0.0
      %2103 = vmatpush.msra.mxu0 0.0
      %2104 = vmatpush.msra.mxu0 0.0
      %2105 = vmatpush.msra.mxu0 0.0
      %2106 = vmatpush.msra.mxu0 0.0
      %2107 = vmatpush.msra.mxu0 0.0
      %2108 = vmatpush.msra.mxu0 0.0
      %2109 = vmatpush.msra.mxu0 0.0
      %2110 = vmatpush.msra.mxu0 0.0
      %2111 = vmatpush.msra.mxu0 0.0
      %2112 = vmatpush.msra.mxu0 0.0
      %2113 = vmatpush.msra.mxu0 0.0
      %2114 = vmatpush.msra.mxu0 0.0
      %2115 = vmatpush.msra.mxu0 %v2098
      %2116 = vmatmul.f32.gmra.mxu0 %v2014
      %v2117 = vpop.f32.mrf.mxu0
      %v2118 = vadd.f32 0.0, %v2117
      %2119 = vmatmul.f32.gmra.mxu0 %v2017
      %v2120 = vpop.f32.mrf.mxu0
      %v2121 = vadd.f32 0.0, %v2120
      %2122 = vmatmul.f32.gmra.mxu0 %v2020
      %v2123 = vpop.f32.mrf.mxu0
      %v2124 = vadd.f32 0.0, %v2123
      %2125 = vmatmul.f32.gmra.mxu0 %v2023
      %v2126 = vpop.f32.mrf.mxu0
      %v2127 = vadd.f32 0.0, %v2126
      %2128 = vmatmul.f32.gmra.mxu0 %v2026
      %v2129 = vpop.f32.mrf.mxu0
      %v2130 = vadd.f32 0.0, %v2129
      %2131 = vmatmul.f32.gmra.mxu0 %v2029
      %v2132 = vpop.f32.mrf.mxu0
      %v2133 = vadd.f32 0.0, %v2132
      %2134 = vmatmul.f32.gmra.mxu0 %v2032
      %v2135 = vpop.f32.mrf.mxu0
      %v2136 = vadd.f32 0.0, %v2135
      %2137 = vmatmul.f32.gmra.mxu0 %v2035
      %v2138 = vpop.f32.mrf.mxu0
      %v2139 = vadd.f32 0.0, %v2138
      %2140 = vmatmul.f32.gmra.mxu0 %v2038
      %v2141 = vpop.f32.mrf.mxu0
      %v2142 = vadd.f32 0.0, %v2141
      %2143 = vmatmul.f32.gmra.mxu0 %v2041
      %v2144 = vpop.f32.mrf.mxu0
      %v2145 = vadd.f32 0.0, %v2144
      %2146 = vmatmul.f32.gmra.mxu0 %v2044
      %v2147 = vpop.f32.mrf.mxu0
      %v2148 = vadd.f32 0.0, %v2147
      %2149 = vmatmul.f32.gmra.mxu0 %v2047
      %v2150 = vpop.f32.mrf.mxu0
      %v2151 = vadd.f32 0.0, %v2150
      %2152 = vmatmul.f32.gmra.mxu0 %v2050
      %v2153 = vpop.f32.mrf.mxu0
      %v2154 = vadd.f32 0.0, %v2153
      %2155 = vmatmul.f32.gmra.mxu0 %v2053
      %v2156 = vpop.f32.mrf.mxu0
      %v2157 = vadd.f32 0.0, %v2156
      %2158 = vmatmul.f32.gmra.mxu0 %v2056
      %v2159 = vpop.f32.mrf.mxu0
      %v2160 = vadd.f32 0.0, %v2159
      %2161 = vmatmul.f32.gmra.mxu0 %v2059
      %v2162 = vpop.f32.mrf.mxu0
      %v2163 = vadd.f32 0.0, %v2162
      %2164 = vmatmul.f32.gmra.mxu0 %v2062
      %v2165 = vpop.f32.mrf.mxu0
      %v2166 = vadd.f32 0.0, %v2165
      %2167 = vmatmul.f32.gmra.mxu0 %v2065
      %v2168 = vpop.f32.mrf.mxu0
      %v2169 = vadd.f32 0.0, %v2168
      %2170 = vmatmul.f32.gmra.mxu0 %v2068
      %v2171 = vpop.f32.mrf.mxu0
      %v2172 = vadd.f32 0.0, %v2171
      %2173 = vmatmul.f32.gmra.mxu0 %v2071
      %v2174 = vpop.f32.mrf.mxu0
      %v2175 = vadd.f32 0.0, %v2174
      %2176 = vmatmul.f32.gmra.mxu0 %v2074
      %v2177 = vpop.f32.mrf.mxu0
      %v2178 = vadd.f32 0.0, %v2177
      %2179 = vmatmul.f32.gmra.mxu0 %v2077
      %v2180 = vpop.f32.mrf.mxu0
      %v2181 = vadd.f32 0.0, %v2180
      %2182 = vmatmul.f32.gmra.mxu0 %v2080
      %v2183 = vpop.f32.mrf.mxu0
      %v2184 = vadd.f32 0.0, %v2183
      %2185 = vmatmul.f32.gmra.mxu0 %v2083
      %v2186 = vpop.f32.mrf.mxu0
      %v2187 = vadd.f32 0.0, %v2186
      %2188 = vmatmul.f32.gmra.mxu0 %v2086
      %v2189 = vpop.f32.mrf.mxu0
      %v2190 = vadd.f32 0.0, %v2189
      %2191 = vmatmul.f32.gmra.mxu0 %v2089
      %v2192 = vpop.f32.mrf.mxu0
      %v2193 = vadd.f32 0.0, %v2192
      %2194 = vmatmul.f32.gmra.mxu0 %v2092
      %v2195 = vpop.f32.mrf.mxu0
      %v2196 = vadd.f32 0.0, %v2195
      %2197 = vmatmul.f32.gmra.mxu0 %v2095
      %v2198 = vpop.f32.mrf.mxu0
      %v2199 = vadd.f32 0.0, %v2198
      %2200 = vdwg.mxu0
      %v2201 = vadd.f32 %v1953, %v2118
      %v2202 = vadd.f32 %v1954, %v2121
      %v2203 = vadd.f32 %v1955, %v2124
      %v2204 = vadd.f32 %v1956, %v2127
      %v2205 = vadd.f32 %v1957, %v2130
      %v2206 = vadd.f32 %v1958, %v2133
      %v2207 = vadd.f32 %v1959, %v2136
      %v2208 = vadd.f32 %v1960, %v2139
      %v2209 = vadd.f32 %v1961, %v2142
      %v2210 = vadd.f32 %v1962, %v2145
      %v2211 = vadd.f32 %v1963, %v2148
      %v2212 = vadd.f32 %v1964, %v2151
      %v2213 = vadd.f32 %v1965, %v2154
      %v2214 = vadd.f32 %v1966, %v2157
      %v2215 = vadd.f32 %v1967, %v2160
      %v2216 = vadd.f32 %v1968, %v2163
      %v2217 = vadd.f32 %v1969, %v2166
      %v2218 = vadd.f32 %v1970, %v2169
      %v2219 = vadd.f32 %v1971, %v2172
      %v2220 = vadd.f32 %v1972, %v2175
      %v2221 = vadd.f32 %v1973, %v2178
      %v2222 = vadd.f32 %v1974, %v2181
      %v2223 = vadd.f32 %v1975, %v2184
      %v2224 = vadd.f32 %v1976, %v2187
      %v2225 = vadd.f32 %v1977, %v2190
      %v2226 = vadd.f32 %v1978, %v2193
      %v2227 = vadd.f32 %v1979, %v2196
      %v2228 = vadd.f32 %v1980, %v2199
      %s2229 = sadd.s32 %s240, 34
      %s2230 = scalar_lea.vmem %s219, %s2229
      %v2231 = vld [vmem:[%s2230] sm:$0xff]
      %v2232 = vld [vmem:[%s2230 + $0x8] sm:$0xff]
      %v2233 = vld [vmem:[%s2230 + $0x10] sm:$0xff]
      %v2234 = vld [vmem:[%s2230 + $0x18] sm:$0xff]
      %v2235 = vld [vmem:[%s2230 + $0x20] sm:$0xff]
      %v2236 = vld [vmem:[%s2230 + $0x28] sm:$0xff]
      %v2237 = vld [vmem:[%s2230 + $0x30] sm:$0xff]
      %v2238 = vld [vmem:[%s2230 + $0x38] sm:$0xff]
      %v2239 = vld [vmem:[%s2230 + $0x40] sm:$0xff]
      %v2240 = vld [vmem:[%s2230 + $0x48] sm:$0xff]
      %v2241 = vld [vmem:[%s2230 + $0x50] sm:$0xff]
      %v2242 = vld [vmem:[%s2230 + $0x58] sm:$0xff]
      %v2243 = vld [vmem:[%s2230 + $0x60] sm:$0xff]
      %v2244 = vld [vmem:[%s2230 + $0x68] sm:$0xff]
      %v2245 = vld [vmem:[%s2230 + $0x70] sm:$0xff]
      %v2246 = vld [vmem:[%s2230 + $0x78] sm:$0xff]
      %v2247 = vld [vmem:[%s2230 + $0x80] sm:$0xff]
      %v2248 = vld [vmem:[%s2230 + $0x88] sm:$0xff]
      %v2249 = vld [vmem:[%s2230 + $0x90] sm:$0xff]
      %v2250 = vld [vmem:[%s2230 + $0x98] sm:$0xff]
      %v2251 = vld [vmem:[%s2230 + $0xa0] sm:$0xff]
      %v2252 = vld [vmem:[%s2230 + $0xa8] sm:$0xff]
      %v2253 = vld [vmem:[%s2230 + $0xb0] sm:$0xff]
      %v2254 = vld [vmem:[%s2230 + $0xb8] sm:$0xff]
      %v2255 = vld [vmem:[%s2230 + $0xc0] sm:$0xff]
      %v2256 = vld [vmem:[%s2230 + $0xc8] sm:$0xff]
      %v2257 = vld [vmem:[%s2230 + $0xd0] sm:$0xff]
      %v2258 = vld [vmem:[%s2230 + $0xd8] sm:$0xff]
      %s2259 = scalar_lea.vmem %s223, 32
      %v2260 = vld [vmem:[%s2259] sm:$0xf]
      %v2262 = vsel %vm275, %v2231, 0
      %v2265 = vsel %vm275, %v2232, 0
      %v2268 = vsel %vm275, %v2233, 0
      %v2271 = vsel %vm275, %v2234, 0
      %v2274 = vsel %vm275, %v2235, 0
      %v2277 = vsel %vm275, %v2236, 0
      %v2280 = vsel %vm275, %v2237, 0
      %v2283 = vsel %vm275, %v2238, 0
      %v2286 = vsel %vm275, %v2239, 0
      %v2289 = vsel %vm275, %v2240, 0
      %v2292 = vsel %vm275, %v2241, 0
      %v2295 = vsel %vm275, %v2242, 0
      %v2298 = vsel %vm275, %v2243, 0
      %v2301 = vsel %vm275, %v2244, 0
      %v2304 = vsel %vm275, %v2245, 0
      %v2307 = vsel %vm275, %v2246, 0
      %v2310 = vsel %vm275, %v2247, 0
      %v2313 = vsel %vm275, %v2248, 0
      %v2316 = vsel %vm275, %v2249, 0
      %v2319 = vsel %vm275, %v2250, 0
      %v2322 = vsel %vm275, %v2251, 0
      %v2325 = vsel %vm275, %v2252, 0
      %v2328 = vsel %vm275, %v2253, 0
      %v2331 = vsel %vm275, %v2254, 0
      %v2334 = vsel %vm275, %v2255, 0
      %v2337 = vsel %vm275, %v2256, 0
      %v2340 = vsel %vm275, %v2257, 0
      %v2343 = vsel %vm275, %v2258, 0
      %v2346 = vsel %vm360, %v2260, 0
      %2348 = vmatpush.msra.mxu0 0.0
      %2349 = vmatpush.msra.mxu0 0.0
      %2350 = vmatpush.msra.mxu0 0.0
      %2351 = vmatpush.msra.mxu0 0.0
      %2352 = vmatpush.msra.mxu0 0.0
      %2353 = vmatpush.msra.mxu0 0.0
      %2354 = vmatpush.msra.mxu0 0.0
      %2355 = vmatpush.msra.mxu0 0.0
      %2356 = vmatpush.msra.mxu0 0.0
      %2357 = vmatpush.msra.mxu0 0.0
      %2358 = vmatpush.msra.mxu0 0.0
      %2359 = vmatpush.msra.mxu0 0.0
      %2360 = vmatpush.msra.mxu0 0.0
      %2361 = vmatpush.msra.mxu0 0.0
      %2362 = vmatpush.msra.mxu0 0.0
      %2363 = vmatpush.msra.mxu0 %v2346
      %2364 = vmatmul.f32.gmra.mxu0 %v2262
      %v2365 = vpop.f32.mrf.mxu0
      %v2366 = vadd.f32 0.0, %v2365
      %2367 = vmatmul.f32.gmra.mxu0 %v2265
      %v2368 = vpop.f32.mrf.mxu0
      %v2369 = vadd.f32 0.0, %v2368
      %2370 = vmatmul.f32.gmra.mxu0 %v2268
      %v2371 = vpop.f32.mrf.mxu0
      %v2372 = vadd.f32 0.0, %v2371
      %2373 = vmatmul.f32.gmra.mxu0 %v2271
      %v2374 = vpop.f32.mrf.mxu0
      %v2375 = vadd.f32 0.0, %v2374
      %2376 = vmatmul.f32.gmra.mxu0 %v2274
      %v2377 = vpop.f32.mrf.mxu0
      %v2378 = vadd.f32 0.0, %v2377
      %2379 = vmatmul.f32.gmra.mxu0 %v2277
      %v2380 = vpop.f32.mrf.mxu0
      %v2381 = vadd.f32 0.0, %v2380
      %2382 = vmatmul.f32.gmra.mxu0 %v2280
      %v2383 = vpop.f32.mrf.mxu0
      %v2384 = vadd.f32 0.0, %v2383
      %2385 = vmatmul.f32.gmra.mxu0 %v2283
      %v2386 = vpop.f32.mrf.mxu0
      %v2387 = vadd.f32 0.0, %v2386
      %2388 = vmatmul.f32.gmra.mxu0 %v2286
      %v2389 = vpop.f32.mrf.mxu0
      %v2390 = vadd.f32 0.0, %v2389
      %2391 = vmatmul.f32.gmra.mxu0 %v2289
      %v2392 = vpop.f32.mrf.mxu0
      %v2393 = vadd.f32 0.0, %v2392
      %2394 = vmatmul.f32.gmra.mxu0 %v2292
      %v2395 = vpop.f32.mrf.mxu0
      %v2396 = vadd.f32 0.0, %v2395
      %2397 = vmatmul.f32.gmra.mxu0 %v2295
      %v2398 = vpop.f32.mrf.mxu0
      %v2399 = vadd.f32 0.0, %v2398
      %2400 = vmatmul.f32.gmra.mxu0 %v2298
      %v2401 = vpop.f32.mrf.mxu0
      %v2402 = vadd.f32 0.0, %v2401
      %2403 = vmatmul.f32.gmra.mxu0 %v2301
      %v2404 = vpop.f32.mrf.mxu0
      %v2405 = vadd.f32 0.0, %v2404
      %2406 = vmatmul.f32.gmra.mxu0 %v2304
      %v2407 = vpop.f32.mrf.mxu0
      %v2408 = vadd.f32 0.0, %v2407
      %2409 = vmatmul.f32.gmra.mxu0 %v2307
      %v2410 = vpop.f32.mrf.mxu0
      %v2411 = vadd.f32 0.0, %v2410
      %2412 = vmatmul.f32.gmra.mxu0 %v2310
      %v2413 = vpop.f32.mrf.mxu0
      %v2414 = vadd.f32 0.0, %v2413
      %2415 = vmatmul.f32.gmra.mxu0 %v2313
      %v2416 = vpop.f32.mrf.mxu0
      %v2417 = vadd.f32 0.0, %v2416
      %2418 = vmatmul.f32.gmra.mxu0 %v2316
      %v2419 = vpop.f32.mrf.mxu0
      %v2420 = vadd.f32 0.0, %v2419
      %2421 = vmatmul.f32.gmra.mxu0 %v2319
      %v2422 = vpop.f32.mrf.mxu0
      %v2423 = vadd.f32 0.0, %v2422
      %2424 = vmatmul.f32.gmra.mxu0 %v2322
      %v2425 = vpop.f32.mrf.mxu0
      %v2426 = vadd.f32 0.0, %v2425
      %2427 = vmatmul.f32.gmra.mxu0 %v2325
      %v2428 = vpop.f32.mrf.mxu0
      %v2429 = vadd.f32 0.0, %v2428
      %2430 = vmatmul.f32.gmra.mxu0 %v2328
      %v2431 = vpop.f32.mrf.mxu0
      %v2432 = vadd.f32 0.0, %v2431
      %2433 = vmatmul.f32.gmra.mxu0 %v2331
      %v2434 = vpop.f32.mrf.mxu0
      %v2435 = vadd.f32 0.0, %v2434
      %2436 = vmatmul.f32.gmra.mxu0 %v2334
      %v2437 = vpop.f32.mrf.mxu0
      %v2438 = vadd.f32 0.0, %v2437
      %2439 = vmatmul.f32.gmra.mxu0 %v2337
      %v2440 = vpop.f32.mrf.mxu0
      %v2441 = vadd.f32 0.0, %v2440
      %2442 = vmatmul.f32.gmra.mxu0 %v2340
      %v2443 = vpop.f32.mrf.mxu0
      %v2444 = vadd.f32 0.0, %v2443
      %2445 = vmatmul.f32.gmra.mxu0 %v2343
      %v2446 = vpop.f32.mrf.mxu0
      %v2447 = vadd.f32 0.0, %v2446
      %2448 = vdwg.mxu0
      %v2449 = vadd.f32 %v2201, %v2366
      %v2450 = vadd.f32 %v2202, %v2369
      %v2451 = vadd.f32 %v2203, %v2372
      %v2452 = vadd.f32 %v2204, %v2375
      %v2453 = vadd.f32 %v2205, %v2378
      %v2454 = vadd.f32 %v2206, %v2381
      %v2455 = vadd.f32 %v2207, %v2384
      %v2456 = vadd.f32 %v2208, %v2387
      %v2457 = vadd.f32 %v2209, %v2390
      %v2458 = vadd.f32 %v2210, %v2393
      %v2459 = vadd.f32 %v2211, %v2396
      %v2460 = vadd.f32 %v2212, %v2399
      %v2461 = vadd.f32 %v2213, %v2402
      %v2462 = vadd.f32 %v2214, %v2405
      %v2463 = vadd.f32 %v2215, %v2408
      %v2464 = vadd.f32 %v2216, %v2411
      %v2465 = vadd.f32 %v2217, %v2414
      %v2466 = vadd.f32 %v2218, %v2417
      %v2467 = vadd.f32 %v2219, %v2420
      %v2468 = vadd.f32 %v2220, %v2423
      %v2469 = vadd.f32 %v2221, %v2426
      %v2470 = vadd.f32 %v2222, %v2429
      %v2471 = vadd.f32 %v2223, %v2432
      %v2472 = vadd.f32 %v2224, %v2435
      %v2473 = vadd.f32 %v2225, %v2438
      %v2474 = vadd.f32 %v2226, %v2441
      %v2475 = vadd.f32 %v2227, %v2444
      %v2476 = vadd.f32 %v2228, %v2447
      %2477 = vst [vmem:[%s238] sm:$0xff] %v2449
      %2478 = vst [vmem:[%s238 + $0x8] sm:$0xff] %v2450
      %2479 = vst [vmem:[%s238 + $0x10] sm:$0xff] %v2451
      %2480 = vst [vmem:[%s238 + $0x18] sm:$0xff] %v2452
      %2481 = vst [vmem:[%s238 + $0x20] sm:$0xff] %v2453
      %2482 = vst [vmem:[%s238 + $0x28] sm:$0xff] %v2454
      %2483 = vst [vmem:[%s238 + $0x30] sm:$0xff] %v2455
      %2484 = vst [vmem:[%s238 + $0x38] sm:$0xff] %v2456
      %2485 = vst [vmem:[%s238 + $0x40] sm:$0xff] %v2457
      %2486 = vst [vmem:[%s238 + $0x48] sm:$0xff] %v2458
      %2487 = vst [vmem:[%s238 + $0x50] sm:$0xff] %v2459
      %2488 = vst [vmem:[%s238 + $0x58] sm:$0xff] %v2460
      %2489 = vst [vmem:[%s238 + $0x60] sm:$0xff] %v2461
      %2490 = vst [vmem:[%s238 + $0x68] sm:$0xff] %v2462
      %2491 = vst [vmem:[%s238 + $0x70] sm:$0xff] %v2463
      %2492 = vst [vmem:[%s238 + $0x78] sm:$0xff] %v2464
      %2493 = vst [vmem:[%s238 + $0x80] sm:$0xff] %v2465
      %2494 = vst [vmem:[%s238 + $0x88] sm:$0xff] %v2466
      %2495 = vst [vmem:[%s238 + $0x90] sm:$0xff] %v2467
      %2496 = vst [vmem:[%s238 + $0x98] sm:$0xff] %v2468
      %2497 = vst [vmem:[%s238 + $0xa0] sm:$0xff] %v2469
      %2498 = vst [vmem:[%s238 + $0xa8] sm:$0xff] %v2470
      %2499 = vst [vmem:[%s238 + $0xb0] sm:$0xff] %v2471
      %2500 = vst [vmem:[%s238 + $0xb8] sm:$0xff] %v2472
      %2501 = vst [vmem:[%s238 + $0xc0] sm:$0xff] %v2473
      %2502 = vst [vmem:[%s238 + $0xc8] sm:$0xff] %v2474
      %2503 = vst [vmem:[%s238 + $0xd0] sm:$0xff] %v2475
      %2504 = vst [vmem:[%s238 + $0xd8] sm:$0xff] %v2476
      %s2505 = smul.u32 28, %s21
      %p2506 = scmp.lt.s32.totalorder %s19, 1
      %s2507 = scalar_select %p2506, %s19, 1
      %p2508 = scmp.lt.s32.totalorder %s2505, 27
      %s2509 = scalar_select %p2508, %s2505, 27
      %p2510 = scmp.lt.s32.totalorder %s20, 0
      %s2511 = scalar_select %p2510, %s20, 0
      %s2512 = sadd.s32 %s2511, %s2509
      %s2513 = smul.addr %s2507, 28
      %s2514 = sadd.s32 %s2512, %s2513
      %s2515 = smul.addr %s2514, 8
      %s2516 = scalar_lea.vmem %s3, %s2515
      // Predicated region
      $region33: #{normal_conv2d_forward.1} parent=31 // pred_check
        %p2517 = pneg %p133
      $region34: #{normal_conv2d_forward.1} parent=31 // pred_check_branch
        %2519 = sbr.rel (%p2517) target = $region36
      $region35: #{normal_conv2d_forward.1} parent=31 // pred_region
        %s2520 = smul.u32 28, %s21
      $region36: #{normal_conv2d_forward.1} parent=31 // pred_fallthru
        _
    $region32: #{normal_conv2d_forward.1} parent=5 // pred_fallthru
      _
    %p2521 = scmp.le.s32.totalorder 2, %s9
    // Predicated region
    $region37: #{normal_conv2d_forward.1} parent=5 // pred_check
      %p2522 = pneg %p2521
    $region38: #{normal_conv2d_forward.1} parent=5 // pred_check_branch
      %2524 = sbr.rel (%p2522) target = $region40
    $region39: #{normal_conv2d_forward.1} parent=5 // pred_region
      %s2525 = ssub.s32 %s9, 2
      // Predicated region
      $region41: #{normal_conv2d_forward.1} parent=39 // pred_check
        %p2526 = pneg %p139
      $region42: #{normal_conv2d_forward.1} parent=39 // pred_check_branch
        %2528 = sbr.rel (%p2526) target = $region44
      $region43: #{normal_conv2d_forward.1} parent=39 // pred_region
        %s2529 = smul.u32 28, %s24
        %p2530 = scmp.lt.s32.totalorder %s22, 1
        %s2531 = scalar_select %p2530, %s22, 1
        %p2532 = scmp.lt.s32.totalorder %s2529, 27
        %s2533 = scalar_select %p2532, %s2529, 27
        %p2534 = scmp.lt.s32.totalorder %s23, 0
        %s2535 = scalar_select %p2534, %s23, 0
        %s2536 = sadd.s32 %s2535, %s2533
        %s2537 = smul.addr %s2531, 28
        %s2538 = sadd.s32 %s2536, %s2537
        %s2539 = smul.addr %s2538, 8
        %s2540 = scalar_lea.vmem %s3, %s2539
      $region44: #{normal_conv2d_forward.1} parent=39 // pred_fallthru
        _
    $region40: #{normal_conv2d_forward.1} parent=5 // pred_fallthru
      _
  $region6: #{normal_conv2d_forward.1} parent=0 // loop_footer
    %s13 = sadd.s32 1, %s9
  $region7: #{normal_conv2d_forward.1} parent=0 // loop_footer_branch
    %8 = sbr.rel target = $region3
  $region8: #{normal_conv2d_forward.1} parent=0 // loop_exit
    _

</llo_original>
